<compile_context>
chip_gen: v6e
topology: v6e:2x2x1
jax: 0.10.0
libtpu: 0.0.40
codegen_flags: <defaults>
</compile_context>

<pallas_src>
import functools

import jax
import jax.numpy as jnp
from jax.experimental import pallas as pl
from jax.experimental.pallas import tpu as pltpu

_NT = 128  # per-tap lane width Cout=48 is zero-padded to (lane-dense MXU N / stores)


def _relu_conv3x3_kernel(x_ref, w_ref, o_ref, *, H, W, Hp, Wp, Cin, K, Nt):
    # x_ref: (Hp, Wp, Cin)   zero-padded input, f32
    # w_ref: (K, Cin, K*Nt)  packed taps, bf16; [kh, ci, kw*Nt + co]
    # o_ref: (H, W, Nt)      f32 (channels >= Cout are zero / discarded by wrapper)
    x = jnp.maximum(x_ref[...], 0.0).astype(jnp.bfloat16)     # ReLU (f32) then bf16
    xf = x.reshape(Hp * Wp, Cin)                              # tile-preserving merge

    accs = None
    for kh in range(K):
        # rows kh*Wp .. kh*Wp + H*Wp : sublane-aligned slice (Wp is a multiple of 8)
        strip = xf[kh * Wp: kh * Wp + H * Wp, :]
        r = jnp.dot(strip, w_ref[kh],
                    preferred_element_type=jnp.float32)       # (H*Wp, K*Nt) on MXU
        r = r.reshape(H, Wp, K * Nt)
        slabs = [r[:, :, kw * Nt:(kw + 1) * Nt] for kw in range(K)]  # 128-aligned
        accs = slabs if accs is None else [a + s for a, s in zip(accs, slabs)]

    # Apply the kw shifts once, on the reduced accumulators (2 small sublane shifts).
    out = accs[0][:, 0:W, :]
    for kw in range(1, K):
        out = out + accs[kw][:, kw:kw + W, :]
    o_ref[...] = out


def pack_weights(w_oihw):
    """(Cout, Cin, 3, 3) f32 -> (3, Cin, 3*_NT) bf16 with Cout zero-padded to _NT.

    Weights are static in the model: call this once and reuse the packed array.
    """
    Cout, Cin, K, K2 = w_oihw.shape
    assert K == K2 == 3 and Cout <= _NT
    wt = jnp.transpose(w_oihw, (2, 1, 3, 0))                  # (kh, ci, kw, co)
    wt = jnp.pad(wt, ((0, 0), (0, 0), (0, 0), (0, _NT - Cout)))
    return wt.reshape(K, Cin, K * _NT).astype(jnp.bfloat16)


@functools.partial(jax.jit, static_argnames=("cout",))
def relu_conv2d(x_nchw, w_packed, *, cout):
    """x_nchw: (1, Cin, H, W) f32; w_packed: pack_weights(w) -> (1, cout, H, W) f32."""
    n, Cin, H, W = x_nchw.shape
    assert n == 1  # the module runs batch 1
    K = w_packed.shape[0]
    Hp, Wp = H + K - 1, W + K - 1

    # Glue (fused by XLA inside this jit): NCHW -> HWC + zero pad of 1 on each side.
    x_hwc = jnp.transpose(x_nchw[0], (1, 2, 0))               # (H, W, Cin)
    x_pad = jnp.pad(x_hwc, ((1, 1), (1, 1), (0, 0)))          # (Hp, Wp, Cin)

    kern = functools.partial(_relu_conv3x3_kernel, H=H, W=W, Hp=Hp, Wp=Wp,
                             Cin=Cin, K=K, Nt=_NT)
    out = pl.pallas_call(
        kern,
        out_shape=jax.ShapeDtypeStruct((H, W, _NT), jnp.float32),
        in_specs=[
            pl.BlockSpec(memory_space=pltpu.MemorySpace.VMEM),
            pl.BlockSpec(memory_space=pltpu.MemorySpace.VMEM),
        ],
        out_specs=pl.BlockSpec(memory_space=pltpu.MemorySpace.VMEM),
    )(x_pad, w_packed)

    # Glue back: (H, W, 128) -> (1, Cout, H, W)
    return jnp.transpose(out[:, :, :cout], (2, 0, 1))[None]


if __name__ == "__main__":
    key = jax.random.PRNGKey(0)
    kx, kw = jax.random.split(key)
    # Shapes implied by the module: input (1, 192, 14, 14), weight (48, 192, 3, 3)
    x = jax.random.normal(kx, (1, 192, 14, 14), dtype=jnp.float32)
    w = jax.random.normal(kw, (48, 192, 3, 3), dtype=jnp.float32) * 0.05

    w_packed = pack_weights(w)  # hoisted out of the per-call path (static weights)
    y = jax.block_until_ready(relu_conv2d(x, w_packed, cout=w.shape[0]))
    assert y.shape == (1, 48, 14, 14), y.shape

    # Reference in the same numerics class (bf16 operands, f32 accumulation).
    y_ref = jax.lax.conv_general_dilated(
        jnp.maximum(x, 0.0).astype(jnp.bfloat16), w.astype(jnp.bfloat16),
        window_strides=(1, 1), padding=((1, 1), (1, 1)),
        dimension_numbers=("NCHW", "OIHW", "NCHW"),
        preferred_element_type=jnp.float32)
    err = float(jnp.max(jnp.abs(y - y_ref)))
    assert err < 2e-2, err

    print("KERNEL_OK")
</pallas_src>

<mosaic_0001>
module attributes {stable_mosaic.version = 11 : i64} {
  func.func @_relu_conv3x3_kernel(%arg0: memref<16x16x192xf32, #tpu.memory_space<vmem>>, %arg1: memref<3x192x384xbf16, #tpu.memory_space<vmem>>, %arg2: memref<14x14x128xf32, #tpu.memory_space<vmem>>) attributes {dimension_semantics = [], scalar_prefetch = 0 : i64, scratch_operands = 0 : i64, tpu.core_type = #tpu.core_type<tc>} {
    %c0 = arith.constant 0 : index
    %c0_0 = arith.constant 0 : index
    %c0_1 = arith.constant 0 : index
    %0 = vector.load %arg0[%c0, %c0_0, %c0_1] : memref<16x16x192xf32, #tpu.memory_space<vmem>>, vector<16x16x192xf32>
    %cst = arith.constant 0.000000e+00 : f32
    %1 = vector.broadcast %cst : f32 to vector<16x16x192xf32>
    %2 = arith.maximumf %0, %1 : vector<16x16x192xf32>
    %3 = arith.truncf %2 : vector<16x16x192xf32> to vector<16x16x192xbf16>
    %4 = vector.shape_cast %3 : vector<16x16x192xbf16> to vector<256x192xbf16>
    %5 = vector.extract_strided_slice %4 {offsets = [0, 0], sizes = [224, 192], strides = [1, 1]} : vector<256x192xbf16> to vector<224x192xbf16>
    %c0_2 = arith.constant 0 : index
    %c0_3 = arith.constant 0 : index
    %c0_4 = arith.constant 0 : index
    %6 = vector.load %arg1[%c0_2, %c0_3, %c0_4] : memref<3x192x384xbf16, #tpu.memory_space<vmem>>, vector<1x192x384xbf16>
    %7 = vector.shape_cast %6 : vector<1x192x384xbf16> to vector<192x384xbf16>
    %cst_5 = arith.constant dense<0.000000e+00> : vector<224x384xf32>
    %8 = tpu.matmul %5, %7, %cst_5 {dimension_numbers = #tpu.dot_dimension_numbers<[1], [0], [0], [1], [0, 0, 1, 1], [], []>} : vector<224x192xbf16>, vector<192x384xbf16>, vector<224x384xf32> -> vector<224x384xf32>
    %9 = vector.shape_cast %8 : vector<224x384xf32> to vector<14x16x384xf32>
    %10 = vector.extract_strided_slice %9 {offsets = [0, 0, 0], sizes = [14, 16, 128], strides = [1, 1, 1]} : vector<14x16x384xf32> to vector<14x16x128xf32>
    %11 = vector.extract_strided_slice %9 {offsets = [0, 0, 128], sizes = [14, 16, 128], strides = [1, 1, 1]} : vector<14x16x384xf32> to vector<14x16x128xf32>
    %12 = vector.extract_strided_slice %9 {offsets = [0, 0, 256], sizes = [14, 16, 128], strides = [1, 1, 1]} : vector<14x16x384xf32> to vector<14x16x128xf32>
    %13 = vector.extract_strided_slice %4 {offsets = [16, 0], sizes = [224, 192], strides = [1, 1]} : vector<256x192xbf16> to vector<224x192xbf16>
    %c1 = arith.constant 1 : index
    %c0_6 = arith.constant 0 : index
    %c0_7 = arith.constant 0 : index
    %14 = vector.load %arg1[%c1, %c0_6, %c0_7] : memref<3x192x384xbf16, #tpu.memory_space<vmem>>, vector<1x192x384xbf16>
    %15 = vector.shape_cast %14 : vector<1x192x384xbf16> to vector<192x384xbf16>
    %cst_8 = arith.constant dense<0.000000e+00> : vector<224x384xf32>
    %16 = tpu.matmul %13, %15, %cst_8 {dimension_numbers = #tpu.dot_dimension_numbers<[1], [0], [0], [1], [0, 0, 1, 1], [], []>} : vector<224x192xbf16>, vector<192x384xbf16>, vector<224x384xf32> -> vector<224x384xf32>
    %17 = vector.shape_cast %16 : vector<224x384xf32> to vector<14x16x384xf32>
    %18 = vector.extract_strided_slice %17 {offsets = [0, 0, 0], sizes = [14, 16, 128], strides = [1, 1, 1]} : vector<14x16x384xf32> to vector<14x16x128xf32>
    %19 = vector.extract_strided_slice %17 {offsets = [0, 0, 128], sizes = [14, 16, 128], strides = [1, 1, 1]} : vector<14x16x384xf32> to vector<14x16x128xf32>
    %20 = vector.extract_strided_slice %17 {offsets = [0, 0, 256], sizes = [14, 16, 128], strides = [1, 1, 1]} : vector<14x16x384xf32> to vector<14x16x128xf32>
    %21 = arith.addf %10, %18 : vector<14x16x128xf32>
    %22 = arith.addf %11, %19 : vector<14x16x128xf32>
    %23 = arith.addf %12, %20 : vector<14x16x128xf32>
    %24 = vector.extract_strided_slice %4 {offsets = [32, 0], sizes = [224, 192], strides = [1, 1]} : vector<256x192xbf16> to vector<224x192xbf16>
    %c2 = arith.constant 2 : index
    %c0_9 = arith.constant 0 : index
    %c0_10 = arith.constant 0 : index
    %25 = vector.load %arg1[%c2, %c0_9, %c0_10] : memref<3x192x384xbf16, #tpu.memory_space<vmem>>, vector<1x192x384xbf16>
    %26 = vector.shape_cast %25 : vector<1x192x384xbf16> to vector<192x384xbf16>
    %cst_11 = arith.constant dense<0.000000e+00> : vector<224x384xf32>
    %27 = tpu.matmul %24, %26, %cst_11 {dimension_numbers = #tpu.dot_dimension_numbers<[1], [0], [0], [1], [0, 0, 1, 1], [], []>} : vector<224x192xbf16>, vector<192x384xbf16>, vector<224x384xf32> -> vector<224x384xf32>
    %28 = vector.shape_cast %27 : vector<224x384xf32> to vector<14x16x384xf32>
    %29 = vector.extract_strided_slice %28 {offsets = [0, 0, 0], sizes = [14, 16, 128], strides = [1, 1, 1]} : vector<14x16x384xf32> to vector<14x16x128xf32>
    %30 = vector.extract_strided_slice %28 {offsets = [0, 0, 128], sizes = [14, 16, 128], strides = [1, 1, 1]} : vector<14x16x384xf32> to vector<14x16x128xf32>
    %31 = vector.extract_strided_slice %28 {offsets = [0, 0, 256], sizes = [14, 16, 128], strides = [1, 1, 1]} : vector<14x16x384xf32> to vector<14x16x128xf32>
    %32 = arith.addf %21, %29 : vector<14x16x128xf32>
    %33 = arith.addf %22, %30 : vector<14x16x128xf32>
    %34 = arith.addf %23, %31 : vector<14x16x128xf32>
    %35 = vector.extract_strided_slice %32 {offsets = [0, 0, 0], sizes = [14, 14, 128], strides = [1, 1, 1]} : vector<14x16x128xf32> to vector<14x14x128xf32>
    %36 = vector.extract_strided_slice %33 {offsets = [0, 1, 0], sizes = [14, 14, 128], strides = [1, 1, 1]} : vector<14x16x128xf32> to vector<14x14x128xf32>
    %37 = arith.addf %35, %36 : vector<14x14x128xf32>
    %38 = vector.extract_strided_slice %34 {offsets = [0, 2, 0], sizes = [14, 14, 128], strides = [1, 1, 1]} : vector<14x16x128xf32> to vector<14x14x128xf32>
    %39 = arith.addf %37, %38 : vector<14x14x128xf32>
    %c0_12 = arith.constant 0 : index
    %c0_13 = arith.constant 0 : index
    %c0_14 = arith.constant 0 : index
    %40 = vector.load %arg2[%c0_12, %c0_13, %c0_14] : memref<14x14x128xf32, #tpu.memory_space<vmem>>, vector<14x14x128xf32>
    tpu.vector_store %arg2[%c0_12, %c0_13, %c0_14], %39 {strides = array<i32>} : memref<14x14x128xf32, #tpu.memory_space<vmem>>, vector<14x14x128xf32>,
    return
  }
}

</mosaic_0001>

<llo_original>
// kernel: relu_conv2d.1
$region0: #{relu_conv2d.1}
  #allocation0 [shape = 'u32[]', space=smem, size = 0x4, offset = 0x4, fixed_abs, tag = 'smem constant byte address 0x4 - core index']
  #allocation1 [shape = 'u32[144,128]{1,0:T(1,128)}', space=vmem, size = 0x12000, scoped, tag = 'internal scratch']
  %s0 = inlined_call_operand.vmem [shape: f32[16,16,192], index: 0, kind: input, shape index: {}]
  %s1 = inlined_call_operand.vmem [shape: bf16[3,192,384], index: 1, kind: input, shape index: {}]
  %s2 = inlined_call_operand.vmem [shape: f32[14,14,128], index: 2, kind: output, shape index: {}]
  %s3 = sld [smem:[#allocation0]]
  $region18: #{relu_conv2d.1} parent=0
    _
  %s5 = ssub.s32 1, %s3
  %s6 = scalar_select 0, %s5, %s3
  // Predicated region
  $region2: #{relu_conv2d.1} parent=0 // pred_check
    _
  $region3: #{relu_conv2d.1} parent=0 // pred_check_branch
    %8 = sbr.rel (0) target = $region5
  $region4: #{relu_conv2d.1} parent=0 // pred_region
    _
  $region5: #{relu_conv2d.1} parent=0 // pred_fallthru
    _
  // Predicated region
  $region6: #{relu_conv2d.1} parent=0 // pred_check
    _
  $region7: #{relu_conv2d.1} parent=0 // pred_check_branch
    %10 = sbr.rel (0) target = $region9
  $region8: #{relu_conv2d.1} parent=0 // pred_region
    _
  $region9: #{relu_conv2d.1} parent=0 // pred_fallthru
    _
  %v12 = vld [vmem:[%s0] sm:$0xff]
  %v13 = vld [vmem:[%s0 + $0x8] sm:$0xff]
  %v14 = vld [vmem:[%s0 + $0x10] sm:$0xff]
  %v15 = vld [vmem:[%s0 + $0x18] sm:$0xff]
  %v16 = vld [vmem:[%s0 + $0x20] sm:$0xff]
  %v17 = vld [vmem:[%s0 + $0x28] sm:$0xff]
  %v18 = vld [vmem:[%s0 + $0x30] sm:$0xff]
  %v19 = vld [vmem:[%s0 + $0x38] sm:$0xff]
  %v20 = vld [vmem:[%s0 + $0x40] sm:$0xff]
  %v21 = vld [vmem:[%s0 + $0x48] sm:$0xff]
  %v22 = vld [vmem:[%s0 + $0x50] sm:$0xff]
  %v23 = vld [vmem:[%s0 + $0x58] sm:$0xff]
  %v24 = vld [vmem:[%s0 + $0x60] sm:$0xff]
  %v25 = vld [vmem:[%s0 + $0x68] sm:$0xff]
  %v26 = vld [vmem:[%s0 + $0x70] sm:$0xff]
  %v27 = vld [vmem:[%s0 + $0x78] sm:$0xff]
  %v28 = vld [vmem:[%s0 + $0x80] sm:$0xff]
  %v29 = vld [vmem:[%s0 + $0x88] sm:$0xff]
  %v30 = vld [vmem:[%s0 + $0x90] sm:$0xff]
  %v31 = vld [vmem:[%s0 + $0x98] sm:$0xff]
  %v32 = vld [vmem:[%s0 + $0xa0] sm:$0xff]
  %v33 = vld [vmem:[%s0 + $0xa8] sm:$0xff]
  %v34 = vld [vmem:[%s0 + $0xb0] sm:$0xff]
  %v35 = vld [vmem:[%s0 + $0xb8] sm:$0xff]
  %v36 = vld [vmem:[%s0 + $0xc0] sm:$0xff]
  %v37 = vld [vmem:[%s0 + $0xc8] sm:$0xff]
  %v38 = vld [vmem:[%s0 + $0xd0] sm:$0xff]
  %v39 = vld [vmem:[%s0 + $0xd8] sm:$0xff]
  %v40 = vld [vmem:[%s0 + $0xe0] sm:$0xff]
  %v41 = vld [vmem:[%s0 + $0xe8] sm:$0xff]
  %v42 = vld [vmem:[%s0 + $0xf0] sm:$0xff]
  %v43 = vld [vmem:[%s0 + $0xf8] sm:$0xff]
  %v44 = vld [vmem:[%s0 + $0x100] sm:$0xff]
  %v45 = vld [vmem:[%s0 + $0x108] sm:$0xff]
  %v46 = vld [vmem:[%s0 + $0x110] sm:$0xff]
  %v47 = vld [vmem:[%s0 + $0x118] sm:$0xff]
  %v48 = vld [vmem:[%s0 + $0x120] sm:$0xff]
  %v49 = vld [vmem:[%s0 + $0x128] sm:$0xff]
  %v50 = vld [vmem:[%s0 + $0x130] sm:$0xff]
  %v51 = vld [vmem:[%s0 + $0x138] sm:$0xff]
  %v52 = vld [vmem:[%s0 + $0x140] sm:$0xff]
  %v53 = vld [vmem:[%s0 + $0x148] sm:$0xff]
  %v54 = vld [vmem:[%s0 + $0x150] sm:$0xff]
  %v55 = vld [vmem:[%s0 + $0x158] sm:$0xff]
  %v56 = vld [vmem:[%s0 + $0x160] sm:$0xff]
  %v57 = vld [vmem:[%s0 + $0x168] sm:$0xff]
  %v58 = vld [vmem:[%s0 + $0x170] sm:$0xff]
  %v59 = vld [vmem:[%s0 + $0x178] sm:$0xff]
  %v60 = vld [vmem:[%s0 + $0x180] sm:$0xff]
  %v61 = vld [vmem:[%s0 + $0x188] sm:$0xff]
  %v62 = vld [vmem:[%s0 + $0x190] sm:$0xff]
  %v63 = vld [vmem:[%s0 + $0x198] sm:$0xff]
  %v64 = vld [vmem:[%s0 + $0x1a0] sm:$0xff]
  %v65 = vld [vmem:[%s0 + $0x1a8] sm:$0xff]
  %v66 = vld [vmem:[%s0 + $0x1b0] sm:$0xff]
  %v67 = vld [vmem:[%s0 + $0x1b8] sm:$0xff]
  %v68 = vld [vmem:[%s0 + $0x1c0] sm:$0xff]
  %v69 = vld [vmem:[%s0 + $0x1c8] sm:$0xff]
  %v70 = vld [vmem:[%s0 + $0x1d0] sm:$0xff]
  %v71 = vld [vmem:[%s0 + $0x1d8] sm:$0xff]
  %v72 = vld [vmem:[%s0 + $0x1e0] sm:$0xff]
  %v73 = vld [vmem:[%s0 + $0x1e8] sm:$0xff]
  %v74 = vld [vmem:[%s0 + $0x1f0] sm:$0xff]
  %v75 = vld [vmem:[%s0 + $0x1f8] sm:$0xff]
  %v76 = vmax.f32 %v12, 0.0
  %v77 = vmax.f32 %v13, 0.0
  %v78 = vmax.f32 %v14, 0.0
  %v79 = vmax.f32 %v15, 0.0
  %v80 = vmax.f32 %v16, 0.0
  %v81 = vmax.f32 %v17, 0.0
  %v82 = vmax.f32 %v18, 0.0
  %v83 = vmax.f32 %v19, 0.0
  %v84 = vmax.f32 %v20, 0.0
  %v85 = vmax.f32 %v21, 0.0
  %v86 = vmax.f32 %v22, 0.0
  %v87 = vmax.f32 %v23, 0.0
  %v88 = vmax.f32 %v24, 0.0
  %v89 = vmax.f32 %v25, 0.0
  %v90 = vmax.f32 %v26, 0.0
  %v91 = vmax.f32 %v27, 0.0
  %v92 = vmax.f32 %v28, 0.0
  %v93 = vmax.f32 %v29, 0.0
  %v94 = vmax.f32 %v30, 0.0
  %v95 = vmax.f32 %v31, 0.0
  %v96 = vmax.f32 %v32, 0.0
  %v97 = vmax.f32 %v33, 0.0
  %v98 = vmax.f32 %v34, 0.0
  %v99 = vmax.f32 %v35, 0.0
  %v100 = vmax.f32 %v36, 0.0
  %v101 = vmax.f32 %v37, 0.0
  %v102 = vmax.f32 %v38, 0.0
  %v103 = vmax.f32 %v39, 0.0
  %v104 = vmax.f32 %v40, 0.0
  %v105 = vmax.f32 %v41, 0.0
  %v106 = vmax.f32 %v42, 0.0
  %v107 = vmax.f32 %v43, 0.0
  %v108 = vmax.f32 %v44, 0.0
  %v109 = vmax.f32 %v45, 0.0
  %v110 = vmax.f32 %v46, 0.0
  %v111 = vmax.f32 %v47, 0.0
  %v112 = vmax.f32 %v48, 0.0
  %v113 = vmax.f32 %v49, 0.0
  %v114 = vmax.f32 %v50, 0.0
  %v115 = vmax.f32 %v51, 0.0
  %v116 = vmax.f32 %v52, 0.0
  %v117 = vmax.f32 %v53, 0.0
  %v118 = vmax.f32 %v54, 0.0
  %v119 = vmax.f32 %v55, 0.0
  %v120 = vmax.f32 %v56, 0.0
  %v121 = vmax.f32 %v57, 0.0
  %v122 = vmax.f32 %v58, 0.0
  %v123 = vmax.f32 %v59, 0.0
  %v124 = vmax.f32 %v60, 0.0
  %v125 = vmax.f32 %v61, 0.0
  %v126 = vmax.f32 %v62, 0.0
  %v127 = vmax.f32 %v63, 0.0
  %v128 = vmax.f32 %v64, 0.0
  %v129 = vmax.f32 %v65, 0.0
  %v130 = vmax.f32 %v66, 0.0
  %v131 = vmax.f32 %v67, 0.0
  %v132 = vmax.f32 %v68, 0.0
  %v133 = vmax.f32 %v69, 0.0
  %v134 = vmax.f32 %v70, 0.0
  %v135 = vmax.f32 %v71, 0.0
  %v136 = vmax.f32 %v72, 0.0
  %v137 = vmax.f32 %v73, 0.0
  %v138 = vmax.f32 %v74, 0.0
  %v139 = vmax.f32 %v75, 0.0
  %v140 = vpack.c.bf16 %v78, %v76
  %v141 = vpack.c.bf16 %v79, %v77
  %v142 = vpack.c.bf16 %v82, %v80
  %v143 = vpack.c.bf16 %v83, %v81
  %v144 = vpack.c.bf16 %v86, %v84
  %v145 = vpack.c.bf16 %v87, %v85
  %v146 = vpack.c.bf16 %v90, %v88
  %v147 = vpack.c.bf16 %v91, %v89
  %v148 = vpack.c.bf16 %v94, %v92
  %v149 = vpack.c.bf16 %v95, %v93
  %v150 = vpack.c.bf16 %v98, %v96
  %v151 = vpack.c.bf16 %v99, %v97
  %v152 = vpack.c.bf16 %v102, %v100
  %v153 = vpack.c.bf16 %v103, %v101
  %v154 = vpack.c.bf16 %v106, %v104
  %v155 = vpack.c.bf16 %v107, %v105
  %v156 = vpack.c.bf16 %v110, %v108
  %v157 = vpack.c.bf16 %v111, %v109
  %v158 = vpack.c.bf16 %v114, %v112
  %v159 = vpack.c.bf16 %v115, %v113
  %v160 = vpack.c.bf16 %v118, %v116
  %v161 = vpack.c.bf16 %v119, %v117
  %v162 = vpack.c.bf16 %v122, %v120
  %v163 = vpack.c.bf16 %v123, %v121
  %v164 = vpack.c.bf16 %v126, %v124
  %v165 = vpack.c.bf16 %v127, %v125
  %v166 = vpack.c.bf16 %v130, %v128
  %v167 = vpack.c.bf16 %v131, %v129
  %v168 = vpack.c.bf16 %v134, %v132
  %v169 = vpack.c.bf16 %v135, %v133
  %v170 = vpack.c.bf16 %v138, %v136
  %v171 = vpack.c.bf16 %v139, %v137
  %v172 = vld [vmem:[%s1] sm:$0xff]
  %v173 = vld [vmem:[%s1 + $0x8] sm:$0xf]
  %v174 = vld [vmem:[%s1 + $0xc] sm:$0xff]
  %v175 = vld [vmem:[%s1 + $0x14] sm:$0xf]
  %v176 = vld [vmem:[%s1 + $0x18] sm:$0xff]
  %v177 = vld [vmem:[%s1 + $0x20] sm:$0xf]
  %v178 = vld [vmem:[%s1 + $0x24] sm:$0xff]
  %v179 = vld [vmem:[%s1 + $0x2c] sm:$0xf]
  %v180 = vld [vmem:[%s1 + $0x30] sm:$0xff]
  %v181 = vld [vmem:[%s1 + $0x38] sm:$0xf]
  %v182 = vld [vmem:[%s1 + $0x3c] sm:$0xff]
  %v183 = vld [vmem:[%s1 + $0x44] sm:$0xf]
  %v184 = vld [vmem:[%s1 + $0x48] sm:$0xff]
  %v185 = vld [vmem:[%s1 + $0x50] sm:$0xf]
  %v186 = vld [vmem:[%s1 + $0x54] sm:$0xff]
  %v187 = vld [vmem:[%s1 + $0x5c] sm:$0xf]
  %v188 = vld [vmem:[%s1 + $0x60] sm:$0xff]
  %v189 = vld [vmem:[%s1 + $0x68] sm:$0xf]
  %v190 = vld [vmem:[%s1 + $0x6c] sm:$0xff]
  %v191 = vld [vmem:[%s1 + $0x74] sm:$0xf]
  %v192 = vld [vmem:[%s1 + $0x78] sm:$0xff]
  %v193 = vld [vmem:[%s1 + $0x80] sm:$0xf]
  %v194 = vld [vmem:[%s1 + $0x84] sm:$0xff]
  %v195 = vld [vmem:[%s1 + $0x8c] sm:$0xf]
  %v196 = vld [vmem:[%s1 + $0x90] sm:$0xff]
  %v197 = vld [vmem:[%s1 + $0x98] sm:$0xf]
  %v198 = vld [vmem:[%s1 + $0x9c] sm:$0xff]
  %v199 = vld [vmem:[%s1 + $0xa4] sm:$0xf]
  %v200 = vld [vmem:[%s1 + $0xa8] sm:$0xff]
  %v201 = vld [vmem:[%s1 + $0xb0] sm:$0xf]
  %v202 = vld [vmem:[%s1 + $0xb4] sm:$0xff]
  %v203 = vld [vmem:[%s1 + $0xbc] sm:$0xf]
  %v204 = vld [vmem:[%s1 + $0xc0] sm:$0xff]
  %v205 = vld [vmem:[%s1 + $0xc8] sm:$0xf]
  %v206 = vld [vmem:[%s1 + $0xcc] sm:$0xff]
  %v207 = vld [vmem:[%s1 + $0xd4] sm:$0xf]
  %v208 = vld [vmem:[%s1 + $0xd8] sm:$0xff]
  %v209 = vld [vmem:[%s1 + $0xe0] sm:$0xf]
  %v210 = vld [vmem:[%s1 + $0xe4] sm:$0xff]
  %v211 = vld [vmem:[%s1 + $0xec] sm:$0xf]
  %v212 = vld [vmem:[%s1 + $0xf0] sm:$0xff]
  %v213 = vld [vmem:[%s1 + $0xf8] sm:$0xf]
  %v214 = vld [vmem:[%s1 + $0xfc] sm:$0xff]
  %v215 = vld [vmem:[%s1 + $0x104] sm:$0xf]
  %v216 = vld [vmem:[%s1 + $0x108] sm:$0xff]
  %v217 = vld [vmem:[%s1 + $0x110] sm:$0xf]
  %v218 = vld [vmem:[%s1 + $0x114] sm:$0xff]
  %v219 = vld [vmem:[%s1 + $0x11c] sm:$0xf]
  %v268 = vunpack.c.l.b16 %v172
  %v269 = vunpack.c.h.b16 %v172
  %v270 = vunpack.c.l.b16 %v173
  %v271 = vunpack.c.l.b16 %v174
  %v272 = vunpack.c.h.b16 %v174
  %v273 = vunpack.c.l.b16 %v175
  %v274 = vunpack.c.l.b16 %v176
  %v275 = vunpack.c.h.b16 %v176
  %v276 = vunpack.c.l.b16 %v177
  %v277 = vunpack.c.l.b16 %v178
  %v278 = vunpack.c.h.b16 %v178
  %v279 = vunpack.c.l.b16 %v179
  %v280 = vunpack.c.l.b16 %v180
  %v281 = vunpack.c.h.b16 %v180
  %v282 = vunpack.c.l.b16 %v181
  %v283 = vunpack.c.l.b16 %v182
  %v284 = vunpack.c.h.b16 %v182
  %v285 = vunpack.c.l.b16 %v183
  %v286 = vunpack.c.l.b16 %v184
  %v287 = vunpack.c.h.b16 %v184
  %v288 = vunpack.c.l.b16 %v185
  %v289 = vunpack.c.l.b16 %v186
  %v290 = vunpack.c.h.b16 %v186
  %v291 = vunpack.c.l.b16 %v187
  %v292 = vunpack.c.l.b16 %v188
  %v293 = vunpack.c.h.b16 %v188
  %v294 = vunpack.c.l.b16 %v189
  %v295 = vunpack.c.l.b16 %v190
  %v296 = vunpack.c.h.b16 %v190
  %v297 = vunpack.c.l.b16 %v191
  %v298 = vunpack.c.l.b16 %v192
  %v299 = vunpack.c.h.b16 %v192
  %v300 = vunpack.c.l.b16 %v193
  %v301 = vunpack.c.l.b16 %v194
  %v302 = vunpack.c.h.b16 %v194
  %v303 = vunpack.c.l.b16 %v195
  %v304 = vunpack.c.l.b16 %v196
  %v305 = vunpack.c.h.b16 %v196
  %v306 = vunpack.c.l.b16 %v197
  %v307 = vunpack.c.l.b16 %v198
  %v308 = vunpack.c.h.b16 %v198
  %v309 = vunpack.c.l.b16 %v199
  %v310 = vunpack.c.l.b16 %v200
  %v311 = vunpack.c.h.b16 %v200
  %v312 = vunpack.c.l.b16 %v201
  %v313 = vunpack.c.l.b16 %v202
  %v314 = vunpack.c.h.b16 %v202
  %v315 = vunpack.c.l.b16 %v203
  %v316 = vunpack.c.l.b16 %v204
  %v317 = vunpack.c.h.b16 %v204
  %v318 = vunpack.c.l.b16 %v205
  %v319 = vunpack.c.l.b16 %v206
  %v320 = vunpack.c.h.b16 %v206
  %v321 = vunpack.c.l.b16 %v207
  %v322 = vunpack.c.l.b16 %v208
  %v323 = vunpack.c.h.b16 %v208
  %v324 = vunpack.c.l.b16 %v209
  %v325 = vunpack.c.l.b16 %v210
  %v326 = vunpack.c.h.b16 %v210
  %v327 = vunpack.c.l.b16 %v211
  %v328 = vunpack.c.l.b16 %v212
  %v329 = vunpack.c.h.b16 %v212
  %v330 = vunpack.c.l.b16 %v213
  %v331 = vunpack.c.l.b16 %v214
  %v332 = vunpack.c.h.b16 %v214
  %v333 = vunpack.c.l.b16 %v215
  %v334 = vunpack.c.l.b16 %v216
  %v335 = vunpack.c.h.b16 %v216
  %v336 = vunpack.c.l.b16 %v217
  %v337 = vunpack.c.l.b16 %v218
  %v338 = vunpack.c.h.b16 %v218
  %v339 = vunpack.c.l.b16 %v219
  %v340 = vpack.c.b16 %v271, %v268
  %v341 = vpack.c.b16 %v272, %v269
  %v342 = vpack.c.b16 %v273, %v270
  %v343 = vpack.c.b16 %v277, %v274
  %v344 = vpack.c.b16 %v278, %v275
  %v345 = vpack.c.b16 %v279, %v276
  %v346 = vpack.c.b16 %v283, %v280
  %v347 = vpack.c.b16 %v284, %v281
  %v348 = vpack.c.b16 %v285, %v282
  %v349 = vpack.c.b16 %v289, %v286
  %v350 = vpack.c.b16 %v290, %v287
  %v351 = vpack.c.b16 %v291, %v288
  %v352 = vpack.c.b16 %v295, %v292
  %v353 = vpack.c.b16 %v296, %v293
  %v354 = vpack.c.b16 %v297, %v294
  %v355 = vpack.c.b16 %v301, %v298
  %v356 = vpack.c.b16 %v302, %v299
  %v357 = vpack.c.b16 %v303, %v300
  %v358 = vpack.c.b16 %v307, %v304
  %v359 = vpack.c.b16 %v308, %v305
  %v360 = vpack.c.b16 %v309, %v306
  %v361 = vpack.c.b16 %v313, %v310
  %v362 = vpack.c.b16 %v314, %v311
  %v363 = vpack.c.b16 %v315, %v312
  %v364 = vpack.c.b16 %v319, %v316
  %v365 = vpack.c.b16 %v320, %v317
  %v366 = vpack.c.b16 %v321, %v318
  %v367 = vpack.c.b16 %v325, %v322
  %v368 = vpack.c.b16 %v326, %v323
  %v369 = vpack.c.b16 %v327, %v324
  %v370 = vpack.c.b16 %v331, %v328
  %v371 = vpack.c.b16 %v332, %v329
  %v372 = vpack.c.b16 %v333, %v330
  %v373 = vpack.c.b16 %v337, %v334
  %v374 = vpack.c.b16 %v338, %v335
  %v375 = vpack.c.b16 %v339, %v336
  %vm412 = vcmask 523264
  %v414 = vsel %vm412, %v141, 0
  %v417 = vsel %vm412, %v143, 0
  %v420 = vsel %vm412, %v145, 0
  %v423 = vsel %vm412, %v147, 0
  %v426 = vsel %vm412, %v149, 0
  %v429 = vsel %vm412, %v151, 0
  %v432 = vsel %vm412, %v153, 0
  %v435 = vsel %vm412, %v155, 0
  %v438 = vsel %vm412, %v157, 0
  %v441 = vsel %vm412, %v159, 0
  %v444 = vsel %vm412, %v161, 0
  %v447 = vsel %vm412, %v163, 0
  %v450 = vsel %vm412, %v165, 0
  %v453 = vsel %vm412, %v167, 0
  %455 = vmatprep.subr.bf16.mxu0 %v362
  %456 = vmatpush1.bf16.msra.mxu0 %v361
  %457 = vmatprep.subr.bf16.mxu0 %v359
  %458 = vmatpush1.bf16.msra.mxu0 %v358
  %459 = vmatprep.subr.bf16.mxu0 %v356
  %460 = vmatpush1.bf16.msra.mxu0 %v355
  %461 = vmatprep.subr.bf16.mxu0 %v353
  %462 = vmatpush1.bf16.msra.mxu0 %v352
  %463 = vmatprep.subr.bf16.mxu0 %v350
  %464 = vmatpush1.bf16.msra.mxu0 %v349
  %465 = vmatprep.subr.bf16.mxu0 %v347
  %466 = vmatpush1.bf16.msra.mxu0 %v346
  %467 = vmatprep.subr.bf16.mxu0 %v344
  %468 = vmatpush1.bf16.msra.mxu0 %v343
  %469 = vmatprep.subr.bf16.mxu0 %v341
  %470 = vmatpush1.bf16.msra.mxu0 %v340
  %471 = vmatprep.subr.bf16.mxu0 0
  %472 = vmatpush2.bf16.msra.mxu0 0
  %473 = vmatprep.subr.bf16.mxu0 0
  %474 = vmatpush2.bf16.msra.mxu0 0
  %475 = vmatprep.subr.bf16.mxu0 0
  %476 = vmatpush2.bf16.msra.mxu0 0
  %477 = vmatprep.subr.bf16.mxu0 0
  %478 = vmatpush2.bf16.msra.mxu0 0
  %479 = vmatprep.subr.bf16.mxu0 %v374
  %480 = vmatpush2.bf16.msra.mxu0 %v373
  %481 = vmatprep.subr.bf16.mxu0 %v371
  %482 = vmatpush2.bf16.msra.mxu0 %v370
  %483 = vmatprep.subr.bf16.mxu0 %v368
  %484 = vmatpush2.bf16.msra.mxu0 %v367
  %485 = vmatprep.subr.bf16.mxu0 %v365
  %486 = vmatpush2.bf16.msra.mxu0 %v364
  %487 = vmatprep.mubr.bf16.mxu0 %v414
  %488 = vmatmul.mubr.bf16.gmra.mxu0 %v140
  %v489 = vpop.f32.mrf.mxu0
  %v490 = vadd.f32 0.0, %v489
  %v491 = vpop.f32.mrf.mxu0
  %v492 = vadd.f32 0.0, %v491
  %v493 = vpop.f32.mrf.mxu0
  %v494 = vadd.f32 0.0, %v493
  %v495 = vpop.f32.mrf.mxu0
  %v496 = vadd.f32 0.0, %v495
  %497 = vmatprep.mubr.bf16.mxu0 %v417
  %498 = vmatmul.mubr.bf16.gmra.mxu0 %v142
  %v499 = vpop.f32.mrf.mxu0
  %v500 = vadd.f32 0.0, %v499
  %v501 = vpop.f32.mrf.mxu0
  %v502 = vadd.f32 0.0, %v501
  %v503 = vpop.f32.mrf.mxu0
  %v504 = vadd.f32 0.0, %v503
  %v505 = vpop.f32.mrf.mxu0
  %v506 = vadd.f32 0.0, %v505
  %507 = vmatprep.mubr.bf16.mxu0 %v420
  %508 = vmatmul.mubr.bf16.gmra.mxu0 %v144
  %v509 = vpop.f32.mrf.mxu0
  %v510 = vadd.f32 0.0, %v509
  %v511 = vpop.f32.mrf.mxu0
  %v512 = vadd.f32 0.0, %v511
  %v513 = vpop.f32.mrf.mxu0
  %v514 = vadd.f32 0.0, %v513
  %v515 = vpop.f32.mrf.mxu0
  %v516 = vadd.f32 0.0, %v515
  %517 = vmatprep.mubr.bf16.mxu0 %v423
  %518 = vmatmul.mubr.bf16.gmra.mxu0 %v146
  %v519 = vpop.f32.mrf.mxu0
  %v520 = vadd.f32 0.0, %v519
  %v521 = vpop.f32.mrf.mxu0
  %v522 = vadd.f32 0.0, %v521
  %v523 = vpop.f32.mrf.mxu0
  %v524 = vadd.f32 0.0, %v523
  %v525 = vpop.f32.mrf.mxu0
  %v526 = vadd.f32 0.0, %v525
  %527 = vmatprep.mubr.bf16.mxu0 %v426
  %528 = vmatmul.mubr.bf16.gmra.mxu0 %v148
  %v529 = vpop.f32.mrf.mxu0
  %v530 = vadd.f32 0.0, %v529
  %v531 = vpop.f32.mrf.mxu0
  %v532 = vadd.f32 0.0, %v531
  %v533 = vpop.f32.mrf.mxu0
  %v534 = vadd.f32 0.0, %v533
  %v535 = vpop.f32.mrf.mxu0
  %v536 = vadd.f32 0.0, %v535
  %537 = vmatprep.mubr.bf16.mxu0 %v429
  %538 = vmatmul.mubr.bf16.gmra.mxu0 %v150
  %v539 = vpop.f32.mrf.mxu0
  %v540 = vadd.f32 0.0, %v539
  %v541 = vpop.f32.mrf.mxu0
  %v542 = vadd.f32 0.0, %v541
  %v543 = vpop.f32.mrf.mxu0
  %v544 = vadd.f32 0.0, %v543
  %v545 = vpop.f32.mrf.mxu0
  %v546 = vadd.f32 0.0, %v545
  %547 = vmatprep.mubr.bf16.mxu0 %v432
  %548 = vmatmul.mubr.bf16.gmra.mxu0 %v152
  %v549 = vpop.f32.mrf.mxu0
  %v550 = vadd.f32 0.0, %v549
  %v551 = vpop.f32.mrf.mxu0
  %v552 = vadd.f32 0.0, %v551
  %v553 = vpop.f32.mrf.mxu0
  %v554 = vadd.f32 0.0, %v553
  %v555 = vpop.f32.mrf.mxu0
  %v556 = vadd.f32 0.0, %v555
  %557 = vmatprep.mubr.bf16.mxu0 %v435
  %558 = vmatmul.mubr.bf16.gmra.mxu0 %v154
  %v559 = vpop.f32.mrf.mxu0
  %v560 = vadd.f32 0.0, %v559
  %v561 = vpop.f32.mrf.mxu0
  %v562 = vadd.f32 0.0, %v561
  %v563 = vpop.f32.mrf.mxu0
  %v564 = vadd.f32 0.0, %v563
  %v565 = vpop.f32.mrf.mxu0
  %v566 = vadd.f32 0.0, %v565
  %567 = vmatprep.mubr.bf16.mxu0 %v438
  %568 = vmatmul.mubr.bf16.gmra.mxu0 %v156
  %v569 = vpop.f32.mrf.mxu0
  %v570 = vadd.f32 0.0, %v569
  %v571 = vpop.f32.mrf.mxu0
  %v572 = vadd.f32 0.0, %v571
  %v573 = vpop.f32.mrf.mxu0
  %v574 = vadd.f32 0.0, %v573
  %v575 = vpop.f32.mrf.mxu0
  %v576 = vadd.f32 0.0, %v575
  %577 = vmatprep.mubr.bf16.mxu0 %v441
  %578 = vmatmul.mubr.bf16.gmra.mxu0 %v158
  %v579 = vpop.f32.mrf.mxu0
  %v580 = vadd.f32 0.0, %v579
  %v581 = vpop.f32.mrf.mxu0
  %v582 = vadd.f32 0.0, %v581
  %v583 = vpop.f32.mrf.mxu0
  %v584 = vadd.f32 0.0, %v583
  %v585 = vpop.f32.mrf.mxu0
  %v586 = vadd.f32 0.0, %v585
  %587 = vmatprep.mubr.bf16.mxu0 %v444
  %588 = vmatmul.mubr.bf16.gmra.mxu0 %v160
  %v589 = vpop.f32.mrf.mxu0
  %v590 = vadd.f32 0.0, %v589
  %v591 = vpop.f32.mrf.mxu0
  %v592 = vadd.f32 0.0, %v591
  %v593 = vpop.f32.mrf.mxu0
  %v594 = vadd.f32 0.0, %v593
  %v595 = vpop.f32.mrf.mxu0
  %v596 = vadd.f32 0.0, %v595
  %597 = vmatprep.mubr.bf16.mxu0 %v447
  %598 = vmatmul.mubr.bf16.gmra.mxu0 %v162
  %v599 = vpop.f32.mrf.mxu0
  %v600 = vadd.f32 0.0, %v599
  %v601 = vpop.f32.mrf.mxu0
  %v602 = vadd.f32 0.0, %v601
  %v603 = vpop.f32.mrf.mxu0
  %v604 = vadd.f32 0.0, %v603
  %v605 = vpop.f32.mrf.mxu0
  %v606 = vadd.f32 0.0, %v605
  %607 = vmatprep.mubr.bf16.mxu0 %v450
  %608 = vmatmul.mubr.bf16.gmra.mxu0 %v164
  %v609 = vpop.f32.mrf.mxu0
  %v610 = vadd.f32 0.0, %v609
  %v611 = vpop.f32.mrf.mxu0
  %v612 = vadd.f32 0.0, %v611
  %v613 = vpop.f32.mrf.mxu0
  %v614 = vadd.f32 0.0, %v613
  %v615 = vpop.f32.mrf.mxu0
  %v616 = vadd.f32 0.0, %v615
  %617 = vmatprep.mubr.bf16.mxu0 %v453
  %618 = vmatmul.mubr.bf16.gmra.mxu0 %v166
  %v619 = vpop.f32.mrf.mxu0
  %v620 = vadd.f32 0.0, %v619
  %v621 = vpop.f32.mrf.mxu0
  %v622 = vadd.f32 0.0, %v621
  %v623 = vpop.f32.mrf.mxu0
  %v624 = vadd.f32 0.0, %v623
  %v625 = vpop.f32.mrf.mxu0
  %v626 = vadd.f32 0.0, %v625
  %627 = vdwg.mxu0
  %628 = vmatprep.subr.bf16.mxu0 0
  %629 = vmatpush1.bf16.msra.mxu0 %v363
  %630 = vmatprep.subr.bf16.mxu0 0
  %631 = vmatpush1.bf16.msra.mxu0 %v360
  %632 = vmatprep.subr.bf16.mxu0 0
  %633 = vmatpush1.bf16.msra.mxu0 %v357
  %634 = vmatprep.subr.bf16.mxu0 0
  %635 = vmatpush1.bf16.msra.mxu0 %v354
  %636 = vmatprep.subr.bf16.mxu0 0
  %637 = vmatpush1.bf16.msra.mxu0 %v351
  %638 = vmatprep.subr.bf16.mxu0 0
  %639 = vmatpush1.bf16.msra.mxu0 %v348
  %640 = vmatprep.subr.bf16.mxu0 0
  %641 = vmatpush1.bf16.msra.mxu0 %v345
  %642 = vmatprep.subr.bf16.mxu0 0
  %643 = vmatpush1.bf16.msra.mxu0 %v342
  %644 = vmatprep.subr.bf16.mxu0 0
  %645 = vmatpush2.bf16.msra.mxu0 0
  %646 = vmatprep.subr.bf16.mxu0 0
  %647 = vmatpush2.bf16.msra.mxu0 0
  %648 = vmatprep.subr.bf16.mxu0 0
  %649 = vmatpush2.bf16.msra.mxu0 0
  %650 = vmatprep.subr.bf16.mxu0 0
  %651 = vmatpush2.bf16.msra.mxu0 0
  %652 = vmatprep.subr.bf16.mxu0 0
  %653 = vmatpush2.bf16.msra.mxu0 %v375
  %654 = vmatprep.subr.bf16.mxu0 0
  %655 = vmatpush2.bf16.msra.mxu0 %v372
  %656 = vmatprep.subr.bf16.mxu0 0
  %657 = vmatpush2.bf16.msra.mxu0 %v369
  %658 = vmatprep.subr.bf16.mxu0 0
  %659 = vmatpush2.bf16.msra.mxu0 %v366
  %660 = vmatprep.mubr.bf16.mxu0 %v414
  %661 = vmatmul.mubr.bf16.gmra.mxu0 %v140
  %v662 = vpop.f32.mrf.mxu0
  %v663 = vadd.f32 0.0, %v662
  %v664 = vpop.f32.mrf.mxu0
  %v665 = vpop.f32.mrf.mxu0
  %v666 = vadd.f32 0.0, %v665
  %v667 = vpop.f32.mrf.mxu0
  %668 = vmatprep.mubr.bf16.mxu0 %v417
  %669 = vmatmul.mubr.bf16.gmra.mxu0 %v142
  %v670 = vpop.f32.mrf.mxu0
  %v671 = vadd.f32 0.0, %v670
  %v672 = vpop.f32.mrf.mxu0
  %v673 = vpop.f32.mrf.mxu0
  %v674 = vadd.f32 0.0, %v673
  %v675 = vpop.f32.mrf.mxu0
  %676 = vmatprep.mubr.bf16.mxu0 %v420
  %677 = vmatmul.mubr.bf16.gmra.mxu0 %v144
  %v678 = vpop.f32.mrf.mxu0
  %v679 = vadd.f32 0.0, %v678
  %v680 = vpop.f32.mrf.mxu0
  %v681 = vpop.f32.mrf.mxu0
  %v682 = vadd.f32 0.0, %v681
  %v683 = vpop.f32.mrf.mxu0
  %684 = vmatprep.mubr.bf16.mxu0 %v423
  %685 = vmatmul.mubr.bf16.gmra.mxu0 %v146
  %v686 = vpop.f32.mrf.mxu0
  %v687 = vadd.f32 0.0, %v686
  %v688 = vpop.f32.mrf.mxu0
  %v689 = vpop.f32.mrf.mxu0
  %v690 = vadd.f32 0.0, %v689
  %v691 = vpop.f32.mrf.mxu0
  %692 = vmatprep.mubr.bf16.mxu0 %v426
  %693 = vmatmul.mubr.bf16.gmra.mxu0 %v148
  %v694 = vpop.f32.mrf.mxu0
  %v695 = vadd.f32 0.0, %v694
  %v696 = vpop.f32.mrf.mxu0
  %v697 = vpop.f32.mrf.mxu0
  %v698 = vadd.f32 0.0, %v697
  %v699 = vpop.f32.mrf.mxu0
  %700 = vmatprep.mubr.bf16.mxu0 %v429
  %701 = vmatmul.mubr.bf16.gmra.mxu0 %v150
  %v702 = vpop.f32.mrf.mxu0
  %v703 = vadd.f32 0.0, %v702
  %v704 = vpop.f32.mrf.mxu0
  %v705 = vpop.f32.mrf.mxu0
  %v706 = vadd.f32 0.0, %v705
  %v707 = vpop.f32.mrf.mxu0
  %708 = vmatprep.mubr.bf16.mxu0 %v432
  %709 = vmatmul.mubr.bf16.gmra.mxu0 %v152
  %v710 = vpop.f32.mrf.mxu0
  %v711 = vadd.f32 0.0, %v710
  %v712 = vpop.f32.mrf.mxu0
  %v713 = vpop.f32.mrf.mxu0
  %v714 = vadd.f32 0.0, %v713
  %v715 = vpop.f32.mrf.mxu0
  %716 = vmatprep.mubr.bf16.mxu0 %v435
  %717 = vmatmul.mubr.bf16.gmra.mxu0 %v154
  %v718 = vpop.f32.mrf.mxu0
  %v719 = vadd.f32 0.0, %v718
  %v720 = vpop.f32.mrf.mxu0
  %v721 = vpop.f32.mrf.mxu0
  %v722 = vadd.f32 0.0, %v721
  %v723 = vpop.f32.mrf.mxu0
  %724 = vmatprep.mubr.bf16.mxu0 %v438
  %725 = vmatmul.mubr.bf16.gmra.mxu0 %v156
  %v726 = vpop.f32.mrf.mxu0
  %v727 = vadd.f32 0.0, %v726
  %v728 = vpop.f32.mrf.mxu0
  %v729 = vpop.f32.mrf.mxu0
  %v730 = vadd.f32 0.0, %v729
  %v731 = vpop.f32.mrf.mxu0
  %732 = vmatprep.mubr.bf16.mxu0 %v441
  %733 = vmatmul.mubr.bf16.gmra.mxu0 %v158
  %v734 = vpop.f32.mrf.mxu0
  %v735 = vadd.f32 0.0, %v734
  %v736 = vpop.f32.mrf.mxu0
  %v737 = vpop.f32.mrf.mxu0
  %v738 = vadd.f32 0.0, %v737
  %v739 = vpop.f32.mrf.mxu0
  %740 = vmatprep.mubr.bf16.mxu0 %v444
  %741 = vmatmul.mubr.bf16.gmra.mxu0 %v160
  %v742 = vpop.f32.mrf.mxu0
  %v743 = vadd.f32 0.0, %v742
  %v744 = vpop.f32.mrf.mxu0
  %v745 = vpop.f32.mrf.mxu0
  %v746 = vadd.f32 0.0, %v745
  %v747 = vpop.f32.mrf.mxu0
  %748 = vmatprep.mubr.bf16.mxu0 %v447
  %749 = vmatmul.mubr.bf16.gmra.mxu0 %v162
  %v750 = vpop.f32.mrf.mxu0
  %v751 = vadd.f32 0.0, %v750
  %v752 = vpop.f32.mrf.mxu0
  %v753 = vpop.f32.mrf.mxu0
  %v754 = vadd.f32 0.0, %v753
  %v755 = vpop.f32.mrf.mxu0
  %756 = vmatprep.mubr.bf16.mxu0 %v450
  %757 = vmatmul.mubr.bf16.gmra.mxu0 %v164
  %v758 = vpop.f32.mrf.mxu0
  %v759 = vadd.f32 0.0, %v758
  %v760 = vpop.f32.mrf.mxu0
  %v761 = vpop.f32.mrf.mxu0
  %v762 = vadd.f32 0.0, %v761
  %v763 = vpop.f32.mrf.mxu0
  %764 = vmatprep.mubr.bf16.mxu0 %v453
  %765 = vmatmul.mubr.bf16.gmra.mxu0 %v166
  %v766 = vpop.f32.mrf.mxu0
  %v767 = vadd.f32 0.0, %v766
  %v768 = vpop.f32.mrf.mxu0
  %v769 = vpop.f32.mrf.mxu0
  %v770 = vadd.f32 0.0, %v769
  %v771 = vpop.f32.mrf.mxu0
  %772 = vdwg.mxu0
  %s773 = scalar_lea.vmem %s1, 288
  %v774 = vld [vmem:[%s773] sm:$0xff]
  %v775 = vld [vmem:[%s773 + $0x8] sm:$0xf]
  %v776 = vld [vmem:[%s773 + $0xc] sm:$0xff]
  %v777 = vld [vmem:[%s773 + $0x14] sm:$0xf]
  %v778 = vld [vmem:[%s773 + $0x18] sm:$0xff]
  %v779 = vld [vmem:[%s773 + $0x20] sm:$0xf]
  %v780 = vld [vmem:[%s773 + $0x24] sm:$0xff]
  %v781 = vld [vmem:[%s773 + $0x2c] sm:$0xf]
  %v782 = vld [vmem:[%s773 + $0x30] sm:$0xff]
  %v783 = vld [vmem:[%s773 + $0x38] sm:$0xf]
  %v784 = vld [vmem:[%s773 + $0x3c] sm:$0xff]
  %v785 = vld [vmem:[%s773 + $0x44] sm:$0xf]
  %v786 = vld [vmem:[%s773 + $0x48] sm:$0xff]
  %v787 = vld [vmem:[%s773 + $0x50] sm:$0xf]
  %v788 = vld [vmem:[%s773 + $0x54] sm:$0xff]
  %v789 = vld [vmem:[%s773 + $0x5c] sm:$0xf]
  %v790 = vld [vmem:[%s773 + $0x60] sm:$0xff]
  %v791 = vld [vmem:[%s773 + $0x68] sm:$0xf]
  %v792 = vld [vmem:[%s773 + $0x6c] sm:$0xff]
  %v793 = vld [vmem:[%s773 + $0x74] sm:$0xf]
  %v794 = vld [vmem:[%s773 + $0x78] sm:$0xff]
  %v795 = vld [vmem:[%s773 + $0x80] sm:$0xf]
  %v796 = vld [vmem:[%s773 + $0x84] sm:$0xff]
  %v797 = vld [vmem:[%s773 + $0x8c] sm:$0xf]
  %v798 = vld [vmem:[%s773 + $0x90] sm:$0xff]
  %v799 = vld [vmem:[%s773 + $0x98] sm:$0xf]
  %v800 = vld [vmem:[%s773 + $0x9c] sm:$0xff]
  %v801 = vld [vmem:[%s773 + $0xa4] sm:$0xf]
  %v802 = vld [vmem:[%s773 + $0xa8] sm:$0xff]
  %v803 = vld [vmem:[%s773 + $0xb0] sm:$0xf]
  %v804 = vld [vmem:[%s773 + $0xb4] sm:$0xff]
  %v805 = vld [vmem:[%s773 + $0xbc] sm:$0xf]
  %v806 = vld [vmem:[%s773 + $0xc0] sm:$0xff]
  %v807 = vld [vmem:[%s773 + $0xc8] sm:$0xf]
  %v808 = vld [vmem:[%s773 + $0xcc] sm:$0xff]
  %v809 = vld [vmem:[%s773 + $0xd4] sm:$0xf]
  %v810 = vld [vmem:[%s773 + $0xd8] sm:$0xff]
  %v811 = vld [vmem:[%s773 + $0xe0] sm:$0xf]
  %v812 = vld [vmem:[%s773 + $0xe4] sm:$0xff]
  %v813 = vld [vmem:[%s773 + $0xec] sm:$0xf]
  %v814 = vld [vmem:[%s773 + $0xf0] sm:$0xff]
  %v815 = vld [vmem:[%s773 + $0xf8] sm:$0xf]
  %v816 = vld [vmem:[%s773 + $0xfc] sm:$0xff]
  %v817 = vld [vmem:[%s773 + $0x104] sm:$0xf]
  %v818 = vld [vmem:[%s773 + $0x108] sm:$0xff]
  %v819 = vld [vmem:[%s773 + $0x110] sm:$0xf]
  %v820 = vld [vmem:[%s773 + $0x114] sm:$0xff]
  %v821 = vld [vmem:[%s773 + $0x11c] sm:$0xf]
  %v870 = vunpack.c.l.b16 %v774
  %v871 = vunpack.c.h.b16 %v774
  %v872 = vunpack.c.l.b16 %v775
  %v873 = vunpack.c.l.b16 %v776
  %v874 = vunpack.c.h.b16 %v776
  %v875 = vunpack.c.l.b16 %v777
  %v876 = vunpack.c.l.b16 %v778
  %v877 = vunpack.c.h.b16 %v778
  %v878 = vunpack.c.l.b16 %v779
  %v879 = vunpack.c.l.b16 %v780
  %v880 = vunpack.c.h.b16 %v780
  %v881 = vunpack.c.l.b16 %v781
  %v882 = vunpack.c.l.b16 %v782
  %v883 = vunpack.c.h.b16 %v782
  %v884 = vunpack.c.l.b16 %v783
  %v885 = vunpack.c.l.b16 %v784
  %v886 = vunpack.c.h.b16 %v784
  %v887 = vunpack.c.l.b16 %v785
  %v888 = vunpack.c.l.b16 %v786
  %v889 = vunpack.c.h.b16 %v786
  %v890 = vunpack.c.l.b16 %v787
  %v891 = vunpack.c.l.b16 %v788
  %v892 = vunpack.c.h.b16 %v788
  %v893 = vunpack.c.l.b16 %v789
  %v894 = vunpack.c.l.b16 %v790
  %v895 = vunpack.c.h.b16 %v790
  %v896 = vunpack.c.l.b16 %v791
  %v897 = vunpack.c.l.b16 %v792
  %v898 = vunpack.c.h.b16 %v792
  %v899 = vunpack.c.l.b16 %v793
  %v900 = vunpack.c.l.b16 %v794
  %v901 = vunpack.c.h.b16 %v794
  %v902 = vunpack.c.l.b16 %v795
  %v903 = vunpack.c.l.b16 %v796
  %v904 = vunpack.c.h.b16 %v796
  %v905 = vunpack.c.l.b16 %v797
  %v906 = vunpack.c.l.b16 %v798
  %v907 = vunpack.c.h.b16 %v798
  %v908 = vunpack.c.l.b16 %v799
  %v909 = vunpack.c.l.b16 %v800
  %v910 = vunpack.c.h.b16 %v800
  %v911 = vunpack.c.l.b16 %v801
  %v912 = vunpack.c.l.b16 %v802
  %v913 = vunpack.c.h.b16 %v802
  %v914 = vunpack.c.l.b16 %v803
  %v915 = vunpack.c.l.b16 %v804
  %v916 = vunpack.c.h.b16 %v804
  %v917 = vunpack.c.l.b16 %v805
  %v918 = vunpack.c.l.b16 %v806
  %v919 = vunpack.c.h.b16 %v806
  %v920 = vunpack.c.l.b16 %v807
  %v921 = vunpack.c.l.b16 %v808
  %v922 = vunpack.c.h.b16 %v808
  %v923 = vunpack.c.l.b16 %v809
  %v924 = vunpack.c.l.b16 %v810
  %v925 = vunpack.c.h.b16 %v810
  %v926 = vunpack.c.l.b16 %v811
  %v927 = vunpack.c.l.b16 %v812
  %v928 = vunpack.c.h.b16 %v812
  %v929 = vunpack.c.l.b16 %v813
  %v930 = vunpack.c.l.b16 %v814
  %v931 = vunpack.c.h.b16 %v814
  %v932 = vunpack.c.l.b16 %v815
  %v933 = vunpack.c.l.b16 %v816
  %v934 = vunpack.c.h.b16 %v816
  %v935 = vunpack.c.l.b16 %v817
  %v936 = vunpack.c.l.b16 %v818
  %v937 = vunpack.c.h.b16 %v818
  %v938 = vunpack.c.l.b16 %v819
  %v939 = vunpack.c.l.b16 %v820
  %v940 = vunpack.c.h.b16 %v820
  %v941 = vunpack.c.l.b16 %v821
  %v942 = vpack.c.b16 %v873, %v870
  %v943 = vpack.c.b16 %v874, %v871
  %v944 = vpack.c.b16 %v875, %v872
  %v945 = vpack.c.b16 %v879, %v876
  %v946 = vpack.c.b16 %v880, %v877
  %v947 = vpack.c.b16 %v881, %v878
  %v948 = vpack.c.b16 %v885, %v882
  %v949 = vpack.c.b16 %v886, %v883
  %v950 = vpack.c.b16 %v887, %v884
  %v951 = vpack.c.b16 %v891, %v888
  %v952 = vpack.c.b16 %v892, %v889
  %v953 = vpack.c.b16 %v893, %v890
  %v954 = vpack.c.b16 %v897, %v894
  %v955 = vpack.c.b16 %v898, %v895
  %v956 = vpack.c.b16 %v899, %v896
  %v957 = vpack.c.b16 %v903, %v900
  %v958 = vpack.c.b16 %v904, %v901
  %v959 = vpack.c.b16 %v905, %v902
  %v960 = vpack.c.b16 %v909, %v906
  %v961 = vpack.c.b16 %v910, %v907
  %v962 = vpack.c.b16 %v911, %v908
  %v963 = vpack.c.b16 %v915, %v912
  %v964 = vpack.c.b16 %v916, %v913
  %v965 = vpack.c.b16 %v917, %v914
  %v966 = vpack.c.b16 %v921, %v918
  %v967 = vpack.c.b16 %v922, %v919
  %v968 = vpack.c.b16 %v923, %v920
  %v969 = vpack.c.b16 %v927, %v924
  %v970 = vpack.c.b16 %v928, %v925
  %v971 = vpack.c.b16 %v929, %v926
  %v972 = vpack.c.b16 %v933, %v930
  %v973 = vpack.c.b16 %v934, %v931
  %v974 = vpack.c.b16 %v935, %v932
  %v975 = vpack.c.b16 %v939, %v936
  %v976 = vpack.c.b16 %v940, %v937
  %v977 = vpack.c.b16 %v941, %v938
  %v1015 = vsel %vm412, %v169, 0
  %1017 = vmatprep.subr.bf16.mxu0 %v964
  %1018 = vmatpush1.bf16.msra.mxu0 %v963
  %1019 = vmatprep.subr.bf16.mxu0 %v961
  %1020 = vmatpush1.bf16.msra.mxu0 %v960
  %1021 = vmatprep.subr.bf16.mxu0 %v958
  %1022 = vmatpush1.bf16.msra.mxu0 %v957
  %1023 = vmatprep.subr.bf16.mxu0 %v955
  %1024 = vmatpush1.bf16.msra.mxu0 %v954
  %1025 = vmatprep.subr.bf16.mxu0 %v952
  %1026 = vmatpush1.bf16.msra.mxu0 %v951
  %1027 = vmatprep.subr.bf16.mxu0 %v949
  %1028 = vmatpush1.bf16.msra.mxu0 %v948
  %1029 = vmatprep.subr.bf16.mxu0 %v946
  %1030 = vmatpush1.bf16.msra.mxu0 %v945
  %1031 = vmatprep.subr.bf16.mxu0 %v943
  %1032 = vmatpush1.bf16.msra.mxu0 %v942
  %1033 = vmatprep.subr.bf16.mxu0 0
  %1034 = vmatpush2.bf16.msra.mxu0 0
  %1035 = vmatprep.subr.bf16.mxu0 0
  %1036 = vmatpush2.bf16.msra.mxu0 0
  %1037 = vmatprep.subr.bf16.mxu0 0
  %1038 = vmatpush2.bf16.msra.mxu0 0
  %1039 = vmatprep.subr.bf16.mxu0 0
  %1040 = vmatpush2.bf16.msra.mxu0 0
  %1041 = vmatprep.subr.bf16.mxu0 %v976
  %1042 = vmatpush2.bf16.msra.mxu0 %v975
  %1043 = vmatprep.subr.bf16.mxu0 %v973
  %1044 = vmatpush2.bf16.msra.mxu0 %v972
  %1045 = vmatprep.subr.bf16.mxu0 %v970
  %1046 = vmatpush2.bf16.msra.mxu0 %v969
  %1047 = vmatprep.subr.bf16.mxu0 %v967
  %1048 = vmatpush2.bf16.msra.mxu0 %v966
  %1049 = vmatprep.mubr.bf16.mxu0 %v417
  %1050 = vmatmul.mubr.bf16.gmra.mxu0 %v142
  %v1051 = vpop.f32.mrf.mxu0
  %v1052 = vadd.f32 0.0, %v1051
  %v1053 = vpop.f32.mrf.mxu0
  %v1054 = vadd.f32 0.0, %v1053
  %v1055 = vpop.f32.mrf.mxu0
  %v1056 = vadd.f32 0.0, %v1055
  %v1057 = vpop.f32.mrf.mxu0
  %v1058 = vadd.f32 0.0, %v1057
  %1059 = vmatprep.mubr.bf16.mxu0 %v420
  %1060 = vmatmul.mubr.bf16.gmra.mxu0 %v144
  %v1061 = vpop.f32.mrf.mxu0
  %v1062 = vadd.f32 0.0, %v1061
  %v1063 = vpop.f32.mrf.mxu0
  %v1064 = vadd.f32 0.0, %v1063
  %v1065 = vpop.f32.mrf.mxu0
  %v1066 = vadd.f32 0.0, %v1065
  %v1067 = vpop.f32.mrf.mxu0
  %v1068 = vadd.f32 0.0, %v1067
  %1069 = vmatprep.mubr.bf16.mxu0 %v423
  %1070 = vmatmul.mubr.bf16.gmra.mxu0 %v146
  %v1071 = vpop.f32.mrf.mxu0
  %v1072 = vadd.f32 0.0, %v1071
  %v1073 = vpop.f32.mrf.mxu0
  %v1074 = vadd.f32 0.0, %v1073
  %v1075 = vpop.f32.mrf.mxu0
  %v1076 = vadd.f32 0.0, %v1075
  %v1077 = vpop.f32.mrf.mxu0
  %v1078 = vadd.f32 0.0, %v1077
  %1079 = vmatprep.mubr.bf16.mxu0 %v426
  %1080 = vmatmul.mubr.bf16.gmra.mxu0 %v148
  %v1081 = vpop.f32.mrf.mxu0
  %v1082 = vadd.f32 0.0, %v1081
  %v1083 = vpop.f32.mrf.mxu0
  %v1084 = vadd.f32 0.0, %v1083
  %v1085 = vpop.f32.mrf.mxu0
  %v1086 = vadd.f32 0.0, %v1085
  %v1087 = vpop.f32.mrf.mxu0
  %v1088 = vadd.f32 0.0, %v1087
  %1089 = vmatprep.mubr.bf16.mxu0 %v429
  %1090 = vmatmul.mubr.bf16.gmra.mxu0 %v150
  %v1091 = vpop.f32.mrf.mxu0
  %v1092 = vadd.f32 0.0, %v1091
  %v1093 = vpop.f32.mrf.mxu0
  %v1094 = vadd.f32 0.0, %v1093
  %v1095 = vpop.f32.mrf.mxu0
  %v1096 = vadd.f32 0.0, %v1095
  %v1097 = vpop.f32.mrf.mxu0
  %v1098 = vadd.f32 0.0, %v1097
  %1099 = vmatprep.mubr.bf16.mxu0 %v432
  %1100 = vmatmul.mubr.bf16.gmra.mxu0 %v152
  %v1101 = vpop.f32.mrf.mxu0
  %v1102 = vadd.f32 0.0, %v1101
  %v1103 = vpop.f32.mrf.mxu0
  %v1104 = vadd.f32 0.0, %v1103
  %v1105 = vpop.f32.mrf.mxu0
  %v1106 = vadd.f32 0.0, %v1105
  %v1107 = vpop.f32.mrf.mxu0
  %v1108 = vadd.f32 0.0, %v1107
  %1109 = vmatprep.mubr.bf16.mxu0 %v435
  %1110 = vmatmul.mubr.bf16.gmra.mxu0 %v154
  %v1111 = vpop.f32.mrf.mxu0
  %v1112 = vadd.f32 0.0, %v1111
  %v1113 = vpop.f32.mrf.mxu0
  %v1114 = vadd.f32 0.0, %v1113
  %v1115 = vpop.f32.mrf.mxu0
  %v1116 = vadd.f32 0.0, %v1115
  %v1117 = vpop.f32.mrf.mxu0
  %v1118 = vadd.f32 0.0, %v1117
  %1119 = vmatprep.mubr.bf16.mxu0 %v438
  %1120 = vmatmul.mubr.bf16.gmra.mxu0 %v156
  %v1121 = vpop.f32.mrf.mxu0
  %v1122 = vadd.f32 0.0, %v1121
  %v1123 = vpop.f32.mrf.mxu0
  %v1124 = vadd.f32 0.0, %v1123
  %v1125 = vpop.f32.mrf.mxu0
  %v1126 = vadd.f32 0.0, %v1125
  %v1127 = vpop.f32.mrf.mxu0
  %v1128 = vadd.f32 0.0, %v1127
  %1129 = vmatprep.mubr.bf16.mxu0 %v441
  %1130 = vmatmul.mubr.bf16.gmra.mxu0 %v158
  %v1131 = vpop.f32.mrf.mxu0
  %v1132 = vadd.f32 0.0, %v1131
  %v1133 = vpop.f32.mrf.mxu0
  %v1134 = vadd.f32 0.0, %v1133
  %v1135 = vpop.f32.mrf.mxu0
  %v1136 = vadd.f32 0.0, %v1135
  %v1137 = vpop.f32.mrf.mxu0
  %v1138 = vadd.f32 0.0, %v1137
  %1139 = vmatprep.mubr.bf16.mxu0 %v444
  %1140 = vmatmul.mubr.bf16.gmra.mxu0 %v160
  %v1141 = vpop.f32.mrf.mxu0
  %v1142 = vadd.f32 0.0, %v1141
  %v1143 = vpop.f32.mrf.mxu0
  %v1144 = vadd.f32 0.0, %v1143
  %v1145 = vpop.f32.mrf.mxu0
  %v1146 = vadd.f32 0.0, %v1145
  %v1147 = vpop.f32.mrf.mxu0
  %v1148 = vadd.f32 0.0, %v1147
  %1149 = vmatprep.mubr.bf16.mxu0 %v447
  %1150 = vmatmul.mubr.bf16.gmra.mxu0 %v162
  %v1151 = vpop.f32.mrf.mxu0
  %v1152 = vadd.f32 0.0, %v1151
  %v1153 = vpop.f32.mrf.mxu0
  %v1154 = vadd.f32 0.0, %v1153
  %v1155 = vpop.f32.mrf.mxu0
  %v1156 = vadd.f32 0.0, %v1155
  %v1157 = vpop.f32.mrf.mxu0
  %v1158 = vadd.f32 0.0, %v1157
  %1159 = vmatprep.mubr.bf16.mxu0 %v450
  %1160 = vmatmul.mubr.bf16.gmra.mxu0 %v164
  %v1161 = vpop.f32.mrf.mxu0
  %v1162 = vadd.f32 0.0, %v1161
  %v1163 = vpop.f32.mrf.mxu0
  %v1164 = vadd.f32 0.0, %v1163
  %v1165 = vpop.f32.mrf.mxu0
  %v1166 = vadd.f32 0.0, %v1165
  %v1167 = vpop.f32.mrf.mxu0
  %v1168 = vadd.f32 0.0, %v1167
  %1169 = vmatprep.mubr.bf16.mxu0 %v453
  %1170 = vmatmul.mubr.bf16.gmra.mxu0 %v166
  %v1171 = vpop.f32.mrf.mxu0
  %v1172 = vadd.f32 0.0, %v1171
  %v1173 = vpop.f32.mrf.mxu0
  %v1174 = vadd.f32 0.0, %v1173
  %v1175 = vpop.f32.mrf.mxu0
  %v1176 = vadd.f32 0.0, %v1175
  %v1177 = vpop.f32.mrf.mxu0
  %v1178 = vadd.f32 0.0, %v1177
  %1179 = vmatprep.mubr.bf16.mxu0 %v1015
  %1180 = vmatmul.mubr.bf16.gmra.mxu0 %v168
  %v1181 = vpop.f32.mrf.mxu0
  %v1182 = vadd.f32 0.0, %v1181
  %v1183 = vpop.f32.mrf.mxu0
  %v1184 = vadd.f32 0.0, %v1183
  %v1185 = vpop.f32.mrf.mxu0
  %v1186 = vadd.f32 0.0, %v1185
  %v1187 = vpop.f32.mrf.mxu0
  %v1188 = vadd.f32 0.0, %v1187
  %1189 = vdwg.mxu0
  %1190 = vmatprep.subr.bf16.mxu0 0
  %1191 = vmatpush1.bf16.msra.mxu0 %v965
  %1192 = vmatprep.subr.bf16.mxu0 0
  %1193 = vmatpush1.bf16.msra.mxu0 %v962
  %1194 = vmatprep.subr.bf16.mxu0 0
  %1195 = vmatpush1.bf16.msra.mxu0 %v959
  %1196 = vmatprep.subr.bf16.mxu0 0
  %1197 = vmatpush1.bf16.msra.mxu0 %v956
  %1198 = vmatprep.subr.bf16.mxu0 0
  %1199 = vmatpush1.bf16.msra.mxu0 %v953
  %1200 = vmatprep.subr.bf16.mxu0 0
  %1201 = vmatpush1.bf16.msra.mxu0 %v950
  %1202 = vmatprep.subr.bf16.mxu0 0
  %1203 = vmatpush1.bf16.msra.mxu0 %v947
  %1204 = vmatprep.subr.bf16.mxu0 0
  %1205 = vmatpush1.bf16.msra.mxu0 %v944
  %1206 = vmatprep.subr.bf16.mxu0 0
  %1207 = vmatpush2.bf16.msra.mxu0 0
  %1208 = vmatprep.subr.bf16.mxu0 0
  %1209 = vmatpush2.bf16.msra.mxu0 0
  %1210 = vmatprep.subr.bf16.mxu0 0
  %1211 = vmatpush2.bf16.msra.mxu0 0
  %1212 = vmatprep.subr.bf16.mxu0 0
  %1213 = vmatpush2.bf16.msra.mxu0 0
  %1214 = vmatprep.subr.bf16.mxu0 0
  %1215 = vmatpush2.bf16.msra.mxu0 %v977
  %1216 = vmatprep.subr.bf16.mxu0 0
  %1217 = vmatpush2.bf16.msra.mxu0 %v974
  %1218 = vmatprep.subr.bf16.mxu0 0
  %1219 = vmatpush2.bf16.msra.mxu0 %v971
  %1220 = vmatprep.subr.bf16.mxu0 0
  %1221 = vmatpush2.bf16.msra.mxu0 %v968
  %1222 = vmatprep.mubr.bf16.mxu0 %v417
  %1223 = vmatmul.mubr.bf16.gmra.mxu0 %v142
  %v1224 = vpop.f32.mrf.mxu0
  %v1225 = vadd.f32 0.0, %v1224
  %v1226 = vpop.f32.mrf.mxu0
  %v1227 = vpop.f32.mrf.mxu0
  %v1228 = vadd.f32 0.0, %v1227
  %v1229 = vpop.f32.mrf.mxu0
  %1230 = vmatprep.mubr.bf16.mxu0 %v420
  %1231 = vmatmul.mubr.bf16.gmra.mxu0 %v144
  %v1232 = vpop.f32.mrf.mxu0
  %v1233 = vadd.f32 0.0, %v1232
  %v1234 = vpop.f32.mrf.mxu0
  %v1235 = vpop.f32.mrf.mxu0
  %v1236 = vadd.f32 0.0, %v1235
  %v1237 = vpop.f32.mrf.mxu0
  %1238 = vmatprep.mubr.bf16.mxu0 %v423
  %1239 = vmatmul.mubr.bf16.gmra.mxu0 %v146
  %v1240 = vpop.f32.mrf.mxu0
  %v1241 = vadd.f32 0.0, %v1240
  %v1242 = vpop.f32.mrf.mxu0
  %v1243 = vpop.f32.mrf.mxu0
  %v1244 = vadd.f32 0.0, %v1243
  %v1245 = vpop.f32.mrf.mxu0
  %1246 = vmatprep.mubr.bf16.mxu0 %v426
  %1247 = vmatmul.mubr.bf16.gmra.mxu0 %v148
  %v1248 = vpop.f32.mrf.mxu0
  %v1249 = vadd.f32 0.0, %v1248
  %v1250 = vpop.f32.mrf.mxu0
  %v1251 = vpop.f32.mrf.mxu0
  %v1252 = vadd.f32 0.0, %v1251
  %v1253 = vpop.f32.mrf.mxu0
  %1254 = vmatprep.mubr.bf16.mxu0 %v429
  %1255 = vmatmul.mubr.bf16.gmra.mxu0 %v150
  %v1256 = vpop.f32.mrf.mxu0
  %v1257 = vadd.f32 0.0, %v1256
  %v1258 = vpop.f32.mrf.mxu0
  %v1259 = vpop.f32.mrf.mxu0
  %v1260 = vadd.f32 0.0, %v1259
  %v1261 = vpop.f32.mrf.mxu0
  %1262 = vmatprep.mubr.bf16.mxu0 %v432
  %1263 = vmatmul.mubr.bf16.gmra.mxu0 %v152
  %v1264 = vpop.f32.mrf.mxu0
  %v1265 = vadd.f32 0.0, %v1264
  %v1266 = vpop.f32.mrf.mxu0
  %v1267 = vpop.f32.mrf.mxu0
  %v1268 = vadd.f32 0.0, %v1267
  %v1269 = vpop.f32.mrf.mxu0
  %1270 = vmatprep.mubr.bf16.mxu0 %v435
  %1271 = vmatmul.mubr.bf16.gmra.mxu0 %v154
  %v1272 = vpop.f32.mrf.mxu0
  %v1273 = vadd.f32 0.0, %v1272
  %v1274 = vpop.f32.mrf.mxu0
  %v1275 = vpop.f32.mrf.mxu0
  %v1276 = vadd.f32 0.0, %v1275
  %v1277 = vpop.f32.mrf.mxu0
  %1278 = vmatprep.mubr.bf16.mxu0 %v438
  %1279 = vmatmul.mubr.bf16.gmra.mxu0 %v156
  %v1280 = vpop.f32.mrf.mxu0
  %v1281 = vadd.f32 0.0, %v1280
  %v1282 = vpop.f32.mrf.mxu0
  %v1283 = vpop.f32.mrf.mxu0
  %v1284 = vadd.f32 0.0, %v1283
  %v1285 = vpop.f32.mrf.mxu0
  %1286 = vmatprep.mubr.bf16.mxu0 %v441
  %1287 = vmatmul.mubr.bf16.gmra.mxu0 %v158
  %v1288 = vpop.f32.mrf.mxu0
  %v1289 = vadd.f32 0.0, %v1288
  %v1290 = vpop.f32.mrf.mxu0
  %v1291 = vpop.f32.mrf.mxu0
  %v1292 = vadd.f32 0.0, %v1291
  %v1293 = vpop.f32.mrf.mxu0
  %1294 = vmatprep.mubr.bf16.mxu0 %v444
  %1295 = vmatmul.mubr.bf16.gmra.mxu0 %v160
  %v1296 = vpop.f32.mrf.mxu0
  %v1297 = vadd.f32 0.0, %v1296
  %v1298 = vpop.f32.mrf.mxu0
  %v1299 = vpop.f32.mrf.mxu0
  %v1300 = vadd.f32 0.0, %v1299
  %v1301 = vpop.f32.mrf.mxu0
  %1302 = vmatprep.mubr.bf16.mxu0 %v447
  %1303 = vmatmul.mubr.bf16.gmra.mxu0 %v162
  %v1304 = vpop.f32.mrf.mxu0
  %v1305 = vadd.f32 0.0, %v1304
  %v1306 = vpop.f32.mrf.mxu0
  %v1307 = vpop.f32.mrf.mxu0
  %v1308 = vadd.f32 0.0, %v1307
  %v1309 = vpop.f32.mrf.mxu0
  %1310 = vmatprep.mubr.bf16.mxu0 %v450
  %1311 = vmatmul.mubr.bf16.gmra.mxu0 %v164
  %v1312 = vpop.f32.mrf.mxu0
  %v1313 = vadd.f32 0.0, %v1312
  %v1314 = vpop.f32.mrf.mxu0
  %v1315 = vpop.f32.mrf.mxu0
  %v1316 = vadd.f32 0.0, %v1315
  %v1317 = vpop.f32.mrf.mxu0
  %1318 = vmatprep.mubr.bf16.mxu0 %v453
  %1319 = vmatmul.mubr.bf16.gmra.mxu0 %v166
  %v1320 = vpop.f32.mrf.mxu0
  %v1321 = vadd.f32 0.0, %v1320
  %v1322 = vpop.f32.mrf.mxu0
  %v1323 = vpop.f32.mrf.mxu0
  %v1324 = vadd.f32 0.0, %v1323
  %v1325 = vpop.f32.mrf.mxu0
  %1326 = vmatprep.mubr.bf16.mxu0 %v1015
  %1327 = vmatmul.mubr.bf16.gmra.mxu0 %v168
  %v1328 = vpop.f32.mrf.mxu0
  %v1329 = vadd.f32 0.0, %v1328
  %v1330 = vpop.f32.mrf.mxu0
  %v1331 = vpop.f32.mrf.mxu0
  %v1332 = vadd.f32 0.0, %v1331
  %v1333 = vpop.f32.mrf.mxu0
  %1334 = vdwg.mxu0
  %v1335 = vadd.f32 %v490, %v1052
  %v1336 = vadd.f32 %v494, %v1056
  %v1337 = vadd.f32 %v500, %v1062
  %v1338 = vadd.f32 %v504, %v1066
  %v1339 = vadd.f32 %v510, %v1072
  %v1340 = vadd.f32 %v514, %v1076
  %v1341 = vadd.f32 %v520, %v1082
  %v1342 = vadd.f32 %v524, %v1086
  %v1343 = vadd.f32 %v530, %v1092
  %v1344 = vadd.f32 %v534, %v1096
  %v1345 = vadd.f32 %v540, %v1102
  %v1346 = vadd.f32 %v544, %v1106
  %v1347 = vadd.f32 %v550, %v1112
  %v1348 = vadd.f32 %v554, %v1116
  %v1349 = vadd.f32 %v560, %v1122
  %v1350 = vadd.f32 %v564, %v1126
  %v1351 = vadd.f32 %v570, %v1132
  %v1352 = vadd.f32 %v574, %v1136
  %v1353 = vadd.f32 %v580, %v1142
  %v1354 = vadd.f32 %v584, %v1146
  %v1355 = vadd.f32 %v590, %v1152
  %v1356 = vadd.f32 %v594, %v1156
  %v1357 = vadd.f32 %v600, %v1162
  %v1358 = vadd.f32 %v604, %v1166
  %v1359 = vadd.f32 %v610, %v1172
  %v1360 = vadd.f32 %v614, %v1176
  %v1361 = vadd.f32 %v620, %v1182
  %v1362 = vadd.f32 %v624, %v1186
  %v1363 = vadd.f32 %v492, %v1054
  %v1364 = vadd.f32 %v496, %v1058
  %v1365 = vadd.f32 %v502, %v1064
  %v1366 = vadd.f32 %v506, %v1068
  %v1367 = vadd.f32 %v512, %v1074
  %v1368 = vadd.f32 %v516, %v1078
  %v1369 = vadd.f32 %v522, %v1084
  %v1370 = vadd.f32 %v526, %v1088
  %v1371 = vadd.f32 %v532, %v1094
  %v1372 = vadd.f32 %v536, %v1098
  %v1373 = vadd.f32 %v542, %v1104
  %v1374 = vadd.f32 %v546, %v1108
  %v1375 = vadd.f32 %v552, %v1114
  %v1376 = vadd.f32 %v556, %v1118
  %v1377 = vadd.f32 %v562, %v1124
  %v1378 = vadd.f32 %v566, %v1128
  %v1379 = vadd.f32 %v572, %v1134
  %v1380 = vadd.f32 %v576, %v1138
  %v1381 = vadd.f32 %v582, %v1144
  %v1382 = vadd.f32 %v586, %v1148
  %v1383 = vadd.f32 %v592, %v1154
  %v1384 = vadd.f32 %v596, %v1158
  %v1385 = vadd.f32 %v602, %v1164
  %v1386 = vadd.f32 %v606, %v1168
  %v1387 = vadd.f32 %v612, %v1174
  %v1388 = vadd.f32 %v616, %v1178
  %v1389 = vadd.f32 %v622, %v1184
  %v1390 = vadd.f32 %v626, %v1188
  %v1391 = vadd.f32 %v663, %v1225
  %v1392 = vadd.f32 %v666, %v1228
  %v1393 = vadd.f32 %v671, %v1233
  %v1394 = vadd.f32 %v674, %v1236
  %v1395 = vadd.f32 %v679, %v1241
  %v1396 = vadd.f32 %v682, %v1244
  %v1397 = vadd.f32 %v687, %v1249
  %v1398 = vadd.f32 %v690, %v1252
  %v1399 = vadd.f32 %v695, %v1257
  %v1400 = vadd.f32 %v698, %v1260
  %v1401 = vadd.f32 %v703, %v1265
  %v1402 = vadd.f32 %v706, %v1268
  %v1403 = vadd.f32 %v711, %v1273
  %v1404 = vadd.f32 %v714, %v1276
  %v1405 = vadd.f32 %v719, %v1281
  %v1406 = vadd.f32 %v722, %v1284
  %v1407 = vadd.f32 %v727, %v1289
  %v1408 = vadd.f32 %v730, %v1292
  %v1409 = vadd.f32 %v735, %v1297
  %v1410 = vadd.f32 %v738, %v1300
  %v1411 = vadd.f32 %v743, %v1305
  %v1412 = vadd.f32 %v746, %v1308
  %v1413 = vadd.f32 %v751, %v1313
  %v1414 = vadd.f32 %v754, %v1316
  %v1415 = vadd.f32 %v759, %v1321
  %v1416 = vadd.f32 %v762, %v1324
  %v1417 = vadd.f32 %v767, %v1329
  %v1418 = vadd.f32 %v770, %v1332
  %s1419 = scalar_lea.vmem %s1, 576
  %v1420 = vld [vmem:[%s1419] sm:$0xff]
  %v1421 = vld [vmem:[%s1419 + $0x8] sm:$0xf]
  %v1422 = vld [vmem:[%s1419 + $0xc] sm:$0xff]
  %v1423 = vld [vmem:[%s1419 + $0x14] sm:$0xf]
  %v1424 = vld [vmem:[%s1419 + $0x18] sm:$0xff]
  %v1425 = vld [vmem:[%s1419 + $0x20] sm:$0xf]
  %v1426 = vld [vmem:[%s1419 + $0x24] sm:$0xff]
  %v1427 = vld [vmem:[%s1419 + $0x2c] sm:$0xf]
  %v1428 = vld [vmem:[%s1419 + $0x30] sm:$0xff]
  %v1429 = vld [vmem:[%s1419 + $0x38] sm:$0xf]
  %v1430 = vld [vmem:[%s1419 + $0x3c] sm:$0xff]
  %v1431 = vld [vmem:[%s1419 + $0x44] sm:$0xf]
  %v1432 = vld [vmem:[%s1419 + $0x48] sm:$0xff]
  %v1433 = vld [vmem:[%s1419 + $0x50] sm:$0xf]
  %v1434 = vld [vmem:[%s1419 + $0x54] sm:$0xff]
  %v1435 = vld [vmem:[%s1419 + $0x5c] sm:$0xf]
  %v1436 = vld [vmem:[%s1419 + $0x60] sm:$0xff]
  %v1437 = vld [vmem:[%s1419 + $0x68] sm:$0xf]
  %v1438 = vld [vmem:[%s1419 + $0x6c] sm:$0xff]
  %v1439 = vld [vmem:[%s1419 + $0x74] sm:$0xf]
  %v1440 = vld [vmem:[%s1419 + $0x78] sm:$0xff]
  %v1441 = vld [vmem:[%s1419 + $0x80] sm:$0xf]
  %v1442 = vld [vmem:[%s1419 + $0x84] sm:$0xff]
  %v1443 = vld [vmem:[%s1419 + $0x8c] sm:$0xf]
  %v1444 = vld [vmem:[%s1419 + $0x90] sm:$0xff]
  %v1445 = vld [vmem:[%s1419 + $0x98] sm:$0xf]
  %v1446 = vld [vmem:[%s1419 + $0x9c] sm:$0xff]
  %v1447 = vld [vmem:[%s1419 + $0xa4] sm:$0xf]
  %v1448 = vld [vmem:[%s1419 + $0xa8] sm:$0xff]
  %v1449 = vld [vmem:[%s1419 + $0xb0] sm:$0xf]
  %v1450 = vld [vmem:[%s1419 + $0xb4] sm:$0xff]
  %v1451 = vld [vmem:[%s1419 + $0xbc] sm:$0xf]
  %v1452 = vld [vmem:[%s1419 + $0xc0] sm:$0xff]
  %v1453 = vld [vmem:[%s1419 + $0xc8] sm:$0xf]
  %v1454 = vld [vmem:[%s1419 + $0xcc] sm:$0xff]
  %v1455 = vld [vmem:[%s1419 + $0xd4] sm:$0xf]
  %v1456 = vld [vmem:[%s1419 + $0xd8] sm:$0xff]
  %v1457 = vld [vmem:[%s1419 + $0xe0] sm:$0xf]
  %v1458 = vld [vmem:[%s1419 + $0xe4] sm:$0xff]
  %v1459 = vld [vmem:[%s1419 + $0xec] sm:$0xf]
  %v1460 = vld [vmem:[%s1419 + $0xf0] sm:$0xff]
  %v1461 = vld [vmem:[%s1419 + $0xf8] sm:$0xf]
  %v1462 = vld [vmem:[%s1419 + $0xfc] sm:$0xff]
  %v1463 = vld [vmem:[%s1419 + $0x104] sm:$0xf]
  %v1464 = vld [vmem:[%s1419 + $0x108] sm:$0xff]
  %v1465 = vld [vmem:[%s1419 + $0x110] sm:$0xf]
  %v1466 = vld [vmem:[%s1419 + $0x114] sm:$0xff]
  %v1467 = vld [vmem:[%s1419 + $0x11c] sm:$0xf]
  %v1516 = vunpack.c.l.b16 %v1420
  %v1517 = vunpack.c.h.b16 %v1420
  %v1518 = vunpack.c.l.b16 %v1421
  %v1519 = vunpack.c.l.b16 %v1422
  %v1520 = vunpack.c.h.b16 %v1422
  %v1521 = vunpack.c.l.b16 %v1423
  %v1522 = vunpack.c.l.b16 %v1424
  %v1523 = vunpack.c.h.b16 %v1424
  %v1524 = vunpack.c.l.b16 %v1425
  %v1525 = vunpack.c.l.b16 %v1426
  %v1526 = vunpack.c.h.b16 %v1426
  %v1527 = vunpack.c.l.b16 %v1427
  %v1528 = vunpack.c.l.b16 %v1428
  %v1529 = vunpack.c.h.b16 %v1428
  %v1530 = vunpack.c.l.b16 %v1429
  %v1531 = vunpack.c.l.b16 %v1430
  %v1532 = vunpack.c.h.b16 %v1430
  %v1533 = vunpack.c.l.b16 %v1431
  %v1534 = vunpack.c.l.b16 %v1432
  %v1535 = vunpack.c.h.b16 %v1432
  %v1536 = vunpack.c.l.b16 %v1433
  %v1537 = vunpack.c.l.b16 %v1434
  %v1538 = vunpack.c.h.b16 %v1434
  %v1539 = vunpack.c.l.b16 %v1435
  %v1540 = vunpack.c.l.b16 %v1436
  %v1541 = vunpack.c.h.b16 %v1436
  %v1542 = vunpack.c.l.b16 %v1437
  %v1543 = vunpack.c.l.b16 %v1438
  %v1544 = vunpack.c.h.b16 %v1438
  %v1545 = vunpack.c.l.b16 %v1439
  %v1546 = vunpack.c.l.b16 %v1440
  %v1547 = vunpack.c.h.b16 %v1440
  %v1548 = vunpack.c.l.b16 %v1441
  %v1549 = vunpack.c.l.b16 %v1442
  %v1550 = vunpack.c.h.b16 %v1442
  %v1551 = vunpack.c.l.b16 %v1443
  %v1552 = vunpack.c.l.b16 %v1444
  %v1553 = vunpack.c.h.b16 %v1444
  %v1554 = vunpack.c.l.b16 %v1445
  %v1555 = vunpack.c.l.b16 %v1446
  %v1556 = vunpack.c.h.b16 %v1446
  %v1557 = vunpack.c.l.b16 %v1447
  %v1558 = vunpack.c.l.b16 %v1448
  %v1559 = vunpack.c.h.b16 %v1448
  %v1560 = vunpack.c.l.b16 %v1449
  %v1561 = vunpack.c.l.b16 %v1450
  %v1562 = vunpack.c.h.b16 %v1450
  %v1563 = vunpack.c.l.b16 %v1451
  %v1564 = vunpack.c.l.b16 %v1452
  %v1565 = vunpack.c.h.b16 %v1452
  %v1566 = vunpack.c.l.b16 %v1453
  %v1567 = vunpack.c.l.b16 %v1454
  %v1568 = vunpack.c.h.b16 %v1454
  %v1569 = vunpack.c.l.b16 %v1455
  %v1570 = vunpack.c.l.b16 %v1456
  %v1571 = vunpack.c.h.b16 %v1456
  %v1572 = vunpack.c.l.b16 %v1457
  %v1573 = vunpack.c.l.b16 %v1458
  %v1574 = vunpack.c.h.b16 %v1458
  %v1575 = vunpack.c.l.b16 %v1459
  %v1576 = vunpack.c.l.b16 %v1460
  %v1577 = vunpack.c.h.b16 %v1460
  %v1578 = vunpack.c.l.b16 %v1461
  %v1579 = vunpack.c.l.b16 %v1462
  %v1580 = vunpack.c.h.b16 %v1462
  %v1581 = vunpack.c.l.b16 %v1463
  %v1582 = vunpack.c.l.b16 %v1464
  %v1583 = vunpack.c.h.b16 %v1464
  %v1584 = vunpack.c.l.b16 %v1465
  %v1585 = vunpack.c.l.b16 %v1466
  %v1586 = vunpack.c.h.b16 %v1466
  %v1587 = vunpack.c.l.b16 %v1467
  %v1588 = vpack.c.b16 %v1519, %v1516
  %v1589 = vpack.c.b16 %v1520, %v1517
  %v1590 = vpack.c.b16 %v1521, %v1518
  %v1591 = vpack.c.b16 %v1525, %v1522
  %v1592 = vpack.c.b16 %v1526, %v1523
  %v1593 = vpack.c.b16 %v1527, %v1524
  %v1594 = vpack.c.b16 %v1531, %v1528
  %v1595 = vpack.c.b16 %v1532, %v1529
  %v1596 = vpack.c.b16 %v1533, %v1530
  %v1597 = vpack.c.b16 %v1537, %v1534
  %v1598 = vpack.c.b16 %v1538, %v1535
  %v1599 = vpack.c.b16 %v1539, %v1536
  %v1600 = vpack.c.b16 %v1543, %v1540
  %v1601 = vpack.c.b16 %v1544, %v1541
  %v1602 = vpack.c.b16 %v1545, %v1542
  %v1603 = vpack.c.b16 %v1549, %v1546
  %v1604 = vpack.c.b16 %v1550, %v1547
  %v1605 = vpack.c.b16 %v1551, %v1548
  %v1606 = vpack.c.b16 %v1555, %v1552
  %v1607 = vpack.c.b16 %v1556, %v1553
  %v1608 = vpack.c.b16 %v1557, %v1554
  %v1609 = vpack.c.b16 %v1561, %v1558
  %v1610 = vpack.c.b16 %v1562, %v1559
  %v1611 = vpack.c.b16 %v1563, %v1560
  %v1612 = vpack.c.b16 %v1567, %v1564
  %v1613 = vpack.c.b16 %v1568, %v1565
  %v1614 = vpack.c.b16 %v1569, %v1566
  %v1615 = vpack.c.b16 %v1573, %v1570
  %v1616 = vpack.c.b16 %v1574, %v1571
  %v1617 = vpack.c.b16 %v1575, %v1572
  %v1618 = vpack.c.b16 %v1579, %v1576
  %v1619 = vpack.c.b16 %v1580, %v1577
  %v1620 = vpack.c.b16 %v1581, %v1578
  %v1621 = vpack.c.b16 %v1585, %v1582
  %v1622 = vpack.c.b16 %v1586, %v1583
  %v1623 = vpack.c.b16 %v1587, %v1584
  %v1661 = vsel %vm412, %v171, 0
  %1663 = vmatprep.subr.bf16.mxu0 %v1610
  %1664 = vmatpush1.bf16.msra.mxu0 %v1609
  %1665 = vmatprep.subr.bf16.mxu0 %v1607
  %1666 = vmatpush1.bf16.msra.mxu0 %v1606
  %1667 = vmatprep.subr.bf16.mxu0 %v1604
  %1668 = vmatpush1.bf16.msra.mxu0 %v1603
  %1669 = vmatprep.subr.bf16.mxu0 %v1601
  %1670 = vmatpush1.bf16.msra.mxu0 %v1600
  %1671 = vmatprep.subr.bf16.mxu0 %v1598
  %1672 = vmatpush1.bf16.msra.mxu0 %v1597
  %1673 = vmatprep.subr.bf16.mxu0 %v1595
  %1674 = vmatpush1.bf16.msra.mxu0 %v1594
  %1675 = vmatprep.subr.bf16.mxu0 %v1592
  %1676 = vmatpush1.bf16.msra.mxu0 %v1591
  %1677 = vmatprep.subr.bf16.mxu0 %v1589
  %1678 = vmatpush1.bf16.msra.mxu0 %v1588
  %1679 = vmatprep.subr.bf16.mxu0 0
  %1680 = vmatpush2.bf16.msra.mxu0 0
  %1681 = vmatprep.subr.bf16.mxu0 0
  %1682 = vmatpush2.bf16.msra.mxu0 0
  %1683 = vmatprep.subr.bf16.mxu0 0
  %1684 = vmatpush2.bf16.msra.mxu0 0
  %1685 = vmatprep.subr.bf16.mxu0 0
  %1686 = vmatpush2.bf16.msra.mxu0 0
  %1687 = vmatprep.subr.bf16.mxu0 %v1622
  %1688 = vmatpush2.bf16.msra.mxu0 %v1621
  %1689 = vmatprep.subr.bf16.mxu0 %v1619
  %1690 = vmatpush2.bf16.msra.mxu0 %v1618
  %1691 = vmatprep.subr.bf16.mxu0 %v1616
  %1692 = vmatpush2.bf16.msra.mxu0 %v1615
  %1693 = vmatprep.subr.bf16.mxu0 %v1613
  %1694 = vmatpush2.bf16.msra.mxu0 %v1612
  %1695 = vmatprep.mubr.bf16.mxu0 %v420
  %1696 = vmatmul.mubr.bf16.gmra.mxu0 %v144
  %v1697 = vpop.f32.mrf.mxu0
  %v1698 = vadd.f32 0.0, %v1697
  %v1699 = vpop.f32.mrf.mxu0
  %v1700 = vadd.f32 0.0, %v1699
  %v1701 = vpop.f32.mrf.mxu0
  %v1702 = vadd.f32 0.0, %v1701
  %v1703 = vpop.f32.mrf.mxu0
  %v1704 = vadd.f32 0.0, %v1703
  %1705 = vmatprep.mubr.bf16.mxu0 %v423
  %1706 = vmatmul.mubr.bf16.gmra.mxu0 %v146
  %v1707 = vpop.f32.mrf.mxu0
  %v1708 = vadd.f32 0.0, %v1707
  %v1709 = vpop.f32.mrf.mxu0
  %v1710 = vadd.f32 0.0, %v1709
  %v1711 = vpop.f32.mrf.mxu0
  %v1712 = vadd.f32 0.0, %v1711
  %v1713 = vpop.f32.mrf.mxu0
  %v1714 = vadd.f32 0.0, %v1713
  %1715 = vmatprep.mubr.bf16.mxu0 %v426
  %1716 = vmatmul.mubr.bf16.gmra.mxu0 %v148
  %v1717 = vpop.f32.mrf.mxu0
  %v1718 = vadd.f32 0.0, %v1717
  %v1719 = vpop.f32.mrf.mxu0
  %v1720 = vadd.f32 0.0, %v1719
  %v1721 = vpop.f32.mrf.mxu0
  %v1722 = vadd.f32 0.0, %v1721
  %v1723 = vpop.f32.mrf.mxu0
  %v1724 = vadd.f32 0.0, %v1723
  %1725 = vmatprep.mubr.bf16.mxu0 %v429
  %1726 = vmatmul.mubr.bf16.gmra.mxu0 %v150
  %v1727 = vpop.f32.mrf.mxu0
  %v1728 = vadd.f32 0.0, %v1727
  %v1729 = vpop.f32.mrf.mxu0
  %v1730 = vadd.f32 0.0, %v1729
  %v1731 = vpop.f32.mrf.mxu0
  %v1732 = vadd.f32 0.0, %v1731
  %v1733 = vpop.f32.mrf.mxu0
  %v1734 = vadd.f32 0.0, %v1733
  %1735 = vmatprep.mubr.bf16.mxu0 %v432
  %1736 = vmatmul.mubr.bf16.gmra.mxu0 %v152
  %v1737 = vpop.f32.mrf.mxu0
  %v1738 = vadd.f32 0.0, %v1737
  %v1739 = vpop.f32.mrf.mxu0
  %v1740 = vadd.f32 0.0, %v1739
  %v1741 = vpop.f32.mrf.mxu0
  %v1742 = vadd.f32 0.0, %v1741
  %v1743 = vpop.f32.mrf.mxu0
  %v1744 = vadd.f32 0.0, %v1743
  %1745 = vmatprep.mubr.bf16.mxu0 %v435
  %1746 = vmatmul.mubr.bf16.gmra.mxu0 %v154
  %v1747 = vpop.f32.mrf.mxu0
  %v1748 = vadd.f32 0.0, %v1747
  %v1749 = vpop.f32.mrf.mxu0
  %v1750 = vadd.f32 0.0, %v1749
  %v1751 = vpop.f32.mrf.mxu0
  %v1752 = vadd.f32 0.0, %v1751
  %v1753 = vpop.f32.mrf.mxu0
  %v1754 = vadd.f32 0.0, %v1753
  %1755 = vmatprep.mubr.bf16.mxu0 %v438
  %1756 = vmatmul.mubr.bf16.gmra.mxu0 %v156
  %v1757 = vpop.f32.mrf.mxu0
  %v1758 = vadd.f32 0.0, %v1757
  %v1759 = vpop.f32.mrf.mxu0
  %v1760 = vadd.f32 0.0, %v1759
  %v1761 = vpop.f32.mrf.mxu0
  %v1762 = vadd.f32 0.0, %v1761
  %v1763 = vpop.f32.mrf.mxu0
  %v1764 = vadd.f32 0.0, %v1763
  %1765 = vmatprep.mubr.bf16.mxu0 %v441
  %1766 = vmatmul.mubr.bf16.gmra.mxu0 %v158
  %v1767 = vpop.f32.mrf.mxu0
  %v1768 = vadd.f32 0.0, %v1767
  %v1769 = vpop.f32.mrf.mxu0
  %v1770 = vadd.f32 0.0, %v1769
  %v1771 = vpop.f32.mrf.mxu0
  %v1772 = vadd.f32 0.0, %v1771
  %v1773 = vpop.f32.mrf.mxu0
  %v1774 = vadd.f32 0.0, %v1773
  %1775 = vmatprep.mubr.bf16.mxu0 %v444
  %1776 = vmatmul.mubr.bf16.gmra.mxu0 %v160
  %v1777 = vpop.f32.mrf.mxu0
  %v1778 = vadd.f32 0.0, %v1777
  %v1779 = vpop.f32.mrf.mxu0
  %v1780 = vadd.f32 0.0, %v1779
  %v1781 = vpop.f32.mrf.mxu0
  %v1782 = vadd.f32 0.0, %v1781
  %v1783 = vpop.f32.mrf.mxu0
  %v1784 = vadd.f32 0.0, %v1783
  %1785 = vmatprep.mubr.bf16.mxu0 %v447
  %1786 = vmatmul.mubr.bf16.gmra.mxu0 %v162
  %v1787 = vpop.f32.mrf.mxu0
  %v1788 = vadd.f32 0.0, %v1787
  %v1789 = vpop.f32.mrf.mxu0
  %v1790 = vadd.f32 0.0, %v1789
  %v1791 = vpop.f32.mrf.mxu0
  %v1792 = vadd.f32 0.0, %v1791
  %v1793 = vpop.f32.mrf.mxu0
  %v1794 = vadd.f32 0.0, %v1793
  %1795 = vmatprep.mubr.bf16.mxu0 %v450
  %1796 = vmatmul.mubr.bf16.gmra.mxu0 %v164
  %v1797 = vpop.f32.mrf.mxu0
  %v1798 = vadd.f32 0.0, %v1797
  %v1799 = vpop.f32.mrf.mxu0
  %v1800 = vadd.f32 0.0, %v1799
  %v1801 = vpop.f32.mrf.mxu0
  %v1802 = vadd.f32 0.0, %v1801
  %v1803 = vpop.f32.mrf.mxu0
  %v1804 = vadd.f32 0.0, %v1803
  %1805 = vmatprep.mubr.bf16.mxu0 %v453
  %1806 = vmatmul.mubr.bf16.gmra.mxu0 %v166
  %v1807 = vpop.f32.mrf.mxu0
  %v1808 = vadd.f32 0.0, %v1807
  %v1809 = vpop.f32.mrf.mxu0
  %v1810 = vadd.f32 0.0, %v1809
  %v1811 = vpop.f32.mrf.mxu0
  %v1812 = vadd.f32 0.0, %v1811
  %v1813 = vpop.f32.mrf.mxu0
  %v1814 = vadd.f32 0.0, %v1813
  %1815 = vmatprep.mubr.bf16.mxu0 %v1015
  %1816 = vmatmul.mubr.bf16.gmra.mxu0 %v168
  %v1817 = vpop.f32.mrf.mxu0
  %v1818 = vadd.f32 0.0, %v1817
  %v1819 = vpop.f32.mrf.mxu0
  %v1820 = vadd.f32 0.0, %v1819
  %v1821 = vpop.f32.mrf.mxu0
  %v1822 = vadd.f32 0.0, %v1821
  %v1823 = vpop.f32.mrf.mxu0
  %v1824 = vadd.f32 0.0, %v1823
  %1825 = vmatprep.mubr.bf16.mxu0 %v1661
  %1826 = vmatmul.mubr.bf16.gmra.mxu0 %v170
  %v1827 = vpop.f32.mrf.mxu0
  %v1828 = vadd.f32 0.0, %v1827
  %v1829 = vpop.f32.mrf.mxu0
  %v1830 = vadd.f32 0.0, %v1829
  %v1831 = vpop.f32.mrf.mxu0
  %v1832 = vadd.f32 0.0, %v1831
  %v1833 = vpop.f32.mrf.mxu0
  %v1834 = vadd.f32 0.0, %v1833
  %1835 = vdwg.mxu0
  %1836 = vmatprep.subr.bf16.mxu0 0
  %1837 = vmatpush1.bf16.msra.mxu0 %v1611
  %1838 = vmatprep.subr.bf16.mxu0 0
  %1839 = vmatpush1.bf16.msra.mxu0 %v1608
  %1840 = vmatprep.subr.bf16.mxu0 0
  %1841 = vmatpush1.bf16.msra.mxu0 %v1605
  %1842 = vmatprep.subr.bf16.mxu0 0
  %1843 = vmatpush1.bf16.msra.mxu0 %v1602
  %1844 = vmatprep.subr.bf16.mxu0 0
  %1845 = vmatpush1.bf16.msra.mxu0 %v1599
  %1846 = vmatprep.subr.bf16.mxu0 0
  %1847 = vmatpush1.bf16.msra.mxu0 %v1596
  %1848 = vmatprep.subr.bf16.mxu0 0
  %1849 = vmatpush1.bf16.msra.mxu0 %v1593
  %1850 = vmatprep.subr.bf16.mxu0 0
  %1851 = vmatpush1.bf16.msra.mxu0 %v1590
  %1852 = vmatprep.subr.bf16.mxu0 0
  %1853 = vmatpush2.bf16.msra.mxu0 0
  %1854 = vmatprep.subr.bf16.mxu0 0
  %1855 = vmatpush2.bf16.msra.mxu0 0
  %1856 = vmatprep.subr.bf16.mxu0 0
  %1857 = vmatpush2.bf16.msra.mxu0 0
  %1858 = vmatprep.subr.bf16.mxu0 0
  %1859 = vmatpush2.bf16.msra.mxu0 0
  %1860 = vmatprep.subr.bf16.mxu0 0
  %1861 = vmatpush2.bf16.msra.mxu0 %v1623
  %1862 = vmatprep.subr.bf16.mxu0 0
  %1863 = vmatpush2.bf16.msra.mxu0 %v1620
  %1864 = vmatprep.subr.bf16.mxu0 0
  %1865 = vmatpush2.bf16.msra.mxu0 %v1617
  %1866 = vmatprep.subr.bf16.mxu0 0
  %1867 = vmatpush2.bf16.msra.mxu0 %v1614
  %1868 = vmatprep.mubr.bf16.mxu0 %v420
  %1869 = vmatmul.mubr.bf16.gmra.mxu0 %v144
  %v1870 = vpop.f32.mrf.mxu0
  %v1871 = vadd.f32 0.0, %v1870
  %v1872 = vpop.f32.mrf.mxu0
  %v1873 = vpop.f32.mrf.mxu0
  %v1874 = vadd.f32 0.0, %v1873
  %v1875 = vpop.f32.mrf.mxu0
  %1876 = vmatprep.mubr.bf16.mxu0 %v423
  %1877 = vmatmul.mubr.bf16.gmra.mxu0 %v146
  %v1878 = vpop.f32.mrf.mxu0
  %v1879 = vadd.f32 0.0, %v1878
  %v1880 = vpop.f32.mrf.mxu0
  %v1881 = vpop.f32.mrf.mxu0
  %v1882 = vadd.f32 0.0, %v1881
  %v1883 = vpop.f32.mrf.mxu0
  %1884 = vmatprep.mubr.bf16.mxu0 %v426
  %1885 = vmatmul.mubr.bf16.gmra.mxu0 %v148
  %v1886 = vpop.f32.mrf.mxu0
  %v1887 = vadd.f32 0.0, %v1886
  %v1888 = vpop.f32.mrf.mxu0
  %v1889 = vpop.f32.mrf.mxu0
  %v1890 = vadd.f32 0.0, %v1889
  %v1891 = vpop.f32.mrf.mxu0
  %1892 = vmatprep.mubr.bf16.mxu0 %v429
  %1893 = vmatmul.mubr.bf16.gmra.mxu0 %v150
  %v1894 = vpop.f32.mrf.mxu0
  %v1895 = vadd.f32 0.0, %v1894
  %v1896 = vpop.f32.mrf.mxu0
  %v1897 = vpop.f32.mrf.mxu0
  %v1898 = vadd.f32 0.0, %v1897
  %v1899 = vpop.f32.mrf.mxu0
  %1900 = vmatprep.mubr.bf16.mxu0 %v432
  %1901 = vmatmul.mubr.bf16.gmra.mxu0 %v152
  %v1902 = vpop.f32.mrf.mxu0
  %v1903 = vadd.f32 0.0, %v1902
  %v1904 = vpop.f32.mrf.mxu0
  %v1905 = vpop.f32.mrf.mxu0
  %v1906 = vadd.f32 0.0, %v1905
  %v1907 = vpop.f32.mrf.mxu0
  %1908 = vmatprep.mubr.bf16.mxu0 %v435
  %1909 = vmatmul.mubr.bf16.gmra.mxu0 %v154
  %v1910 = vpop.f32.mrf.mxu0
  %v1911 = vadd.f32 0.0, %v1910
  %v1912 = vpop.f32.mrf.mxu0
  %v1913 = vpop.f32.mrf.mxu0
  %v1914 = vadd.f32 0.0, %v1913
  %v1915 = vpop.f32.mrf.mxu0
  %1916 = vmatprep.mubr.bf16.mxu0 %v438
  %1917 = vmatmul.mubr.bf16.gmra.mxu0 %v156
  %v1918 = vpop.f32.mrf.mxu0
  %v1919 = vadd.f32 0.0, %v1918
  %v1920 = vpop.f32.mrf.mxu0
  %v1921 = vpop.f32.mrf.mxu0
  %v1922 = vadd.f32 0.0, %v1921
  %v1923 = vpop.f32.mrf.mxu0
  %1924 = vmatprep.mubr.bf16.mxu0 %v441
  %1925 = vmatmul.mubr.bf16.gmra.mxu0 %v158
  %v1926 = vpop.f32.mrf.mxu0
  %v1927 = vadd.f32 0.0, %v1926
  %v1928 = vpop.f32.mrf.mxu0
  %v1929 = vpop.f32.mrf.mxu0
  %v1930 = vadd.f32 0.0, %v1929
  %v1931 = vpop.f32.mrf.mxu0
  %1932 = vmatprep.mubr.bf16.mxu0 %v444
  %1933 = vmatmul.mubr.bf16.gmra.mxu0 %v160
  %v1934 = vpop.f32.mrf.mxu0
  %v1935 = vadd.f32 0.0, %v1934
  %v1936 = vpop.f32.mrf.mxu0
  %v1937 = vpop.f32.mrf.mxu0
  %v1938 = vadd.f32 0.0, %v1937
  %v1939 = vpop.f32.mrf.mxu0
  %1940 = vmatprep.mubr.bf16.mxu0 %v447
  %1941 = vmatmul.mubr.bf16.gmra.mxu0 %v162
  %v1942 = vpop.f32.mrf.mxu0
  %v1943 = vadd.f32 0.0, %v1942
  %v1944 = vpop.f32.mrf.mxu0
  %v1945 = vpop.f32.mrf.mxu0
  %v1946 = vadd.f32 0.0, %v1945
  %v1947 = vpop.f32.mrf.mxu0
  %1948 = vmatprep.mubr.bf16.mxu0 %v450
  %1949 = vmatmul.mubr.bf16.gmra.mxu0 %v164
  %v1950 = vpop.f32.mrf.mxu0
  %v1951 = vadd.f32 0.0, %v1950
  %v1952 = vpop.f32.mrf.mxu0
  %v1953 = vpop.f32.mrf.mxu0
  %v1954 = vadd.f32 0.0, %v1953
  %v1955 = vpop.f32.mrf.mxu0
  %1956 = vmatprep.mubr.bf16.mxu0 %v453
  %1957 = vmatmul.mubr.bf16.gmra.mxu0 %v166
  %v1958 = vpop.f32.mrf.mxu0
  %v1959 = vadd.f32 0.0, %v1958
  %v1960 = vpop.f32.mrf.mxu0
  %v1961 = vpop.f32.mrf.mxu0
  %v1962 = vadd.f32 0.0, %v1961
  %v1963 = vpop.f32.mrf.mxu0
  %1964 = vmatprep.mubr.bf16.mxu0 %v1015
  %1965 = vmatmul.mubr.bf16.gmra.mxu0 %v168
  %v1966 = vpop.f32.mrf.mxu0
  %v1967 = vadd.f32 0.0, %v1966
  %v1968 = vpop.f32.mrf.mxu0
  %v1969 = vpop.f32.mrf.mxu0
  %v1970 = vadd.f32 0.0, %v1969
  %v1971 = vpop.f32.mrf.mxu0
  %1972 = vmatprep.mubr.bf16.mxu0 %v1661
  %1973 = vmatmul.mubr.bf16.gmra.mxu0 %v170
  %v1974 = vpop.f32.mrf.mxu0
  %v1975 = vadd.f32 0.0, %v1974
  %v1976 = vpop.f32.mrf.mxu0
  %v1977 = vpop.f32.mrf.mxu0
  %v1978 = vadd.f32 0.0, %v1977
  %v1979 = vpop.f32.mrf.mxu0
  %1980 = vdwg.mxu0
  %v1981 = vadd.f32 %v1335, %v1698
  %v1982 = vadd.f32 %v1336, %v1702
  %v1983 = vadd.f32 %v1337, %v1708
  %v1984 = vadd.f32 %v1338, %v1712
  %v1985 = vadd.f32 %v1339, %v1718
  %v1986 = vadd.f32 %v1340, %v1722
  %v1987 = vadd.f32 %v1341, %v1728
  %v1988 = vadd.f32 %v1342, %v1732
  %v1989 = vadd.f32 %v1343, %v1738
  %v1990 = vadd.f32 %v1344, %v1742
  %v1991 = vadd.f32 %v1345, %v1748
  %v1992 = vadd.f32 %v1346, %v1752
  %v1993 = vadd.f32 %v1347, %v1758
  %v1994 = vadd.f32 %v1348, %v1762
  %v1995 = vadd.f32 %v1349, %v1768
  %v1996 = vadd.f32 %v1350, %v1772
  %v1997 = vadd.f32 %v1351, %v1778
  %v1998 = vadd.f32 %v1352, %v1782
  %v1999 = vadd.f32 %v1353, %v1788
  %v2000 = vadd.f32 %v1354, %v1792
  %v2001 = vadd.f32 %v1355, %v1798
  %v2002 = vadd.f32 %v1356, %v1802
  %v2003 = vadd.f32 %v1357, %v1808
  %v2004 = vadd.f32 %v1358, %v1812
  %v2005 = vadd.f32 %v1359, %v1818
  %v2006 = vadd.f32 %v1360, %v1822
  %v2007 = vadd.f32 %v1361, %v1828
  %v2008 = vadd.f32 %v1362, %v1832
  %v2009 = vadd.f32 %v1363, %v1700
  %v2010 = vadd.f32 %v1364, %v1704
  %v2011 = vadd.f32 %v1365, %v1710
  %v2012 = vadd.f32 %v1366, %v1714
  %v2013 = vadd.f32 %v1367, %v1720
  %v2014 = vadd.f32 %v1368, %v1724
  %v2015 = vadd.f32 %v1369, %v1730
  %v2016 = vadd.f32 %v1370, %v1734
  %v2017 = vadd.f32 %v1371, %v1740
  %v2018 = vadd.f32 %v1372, %v1744
  %v2019 = vadd.f32 %v1373, %v1750
  %v2020 = vadd.f32 %v1374, %v1754
  %v2021 = vadd.f32 %v1375, %v1760
  %v2022 = vadd.f32 %v1376, %v1764
  %v2023 = vadd.f32 %v1377, %v1770
  %v2024 = vadd.f32 %v1378, %v1774
  %v2025 = vadd.f32 %v1379, %v1780
  %v2026 = vadd.f32 %v1380, %v1784
  %v2027 = vadd.f32 %v1381, %v1790
  %v2028 = vadd.f32 %v1382, %v1794
  %v2029 = vadd.f32 %v1383, %v1800
  %v2030 = vadd.f32 %v1384, %v1804
  %v2031 = vadd.f32 %v1385, %v1810
  %v2032 = vadd.f32 %v1386, %v1814
  %v2033 = vadd.f32 %v1387, %v1820
  %v2034 = vadd.f32 %v1388, %v1824
  %v2035 = vadd.f32 %v1389, %v1830
  %v2036 = vadd.f32 %v1390, %v1834
  %v2037 = vadd.f32 %v1391, %v1871
  %v2038 = vadd.f32 %v1392, %v1874
  %v2039 = vadd.f32 %v1393, %v1879
  %v2040 = vadd.f32 %v1394, %v1882
  %v2041 = vadd.f32 %v1395, %v1887
  %v2042 = vadd.f32 %v1396, %v1890
  %v2043 = vadd.f32 %v1397, %v1895
  %v2044 = vadd.f32 %v1398, %v1898
  %v2045 = vadd.f32 %v1399, %v1903
  %v2046 = vadd.f32 %v1400, %v1906
  %v2047 = vadd.f32 %v1401, %v1911
  %v2048 = vadd.f32 %v1402, %v1914
  %v2049 = vadd.f32 %v1403, %v1919
  %v2050 = vadd.f32 %v1404, %v1922
  %v2051 = vadd.f32 %v1405, %v1927
  %v2052 = vadd.f32 %v1406, %v1930
  %v2053 = vadd.f32 %v1407, %v1935
  %v2054 = vadd.f32 %v1408, %v1938
  %v2055 = vadd.f32 %v1409, %v1943
  %v2056 = vadd.f32 %v1410, %v1946
  %v2057 = vadd.f32 %v1411, %v1951
  %v2058 = vadd.f32 %v1412, %v1954
  %v2059 = vadd.f32 %v1413, %v1959
  %v2060 = vadd.f32 %v1414, %v1962
  %v2061 = vadd.f32 %v1415, %v1967
  %v2062 = vadd.f32 %v1416, %v1970
  %v2063 = vadd.f32 %v1417, %v1975
  %v2064 = vadd.f32 %v1418, %v1978
  %vm2093 = vcmask 1046528
  %v2094 = vrot.slane %v2009, 1
  %v2095 = vrot.slane %v2010, 1
  %v2096 = vsel %vm2093, %v2094, %v2095
  %v2097 = vrot.slane %v2011, 1
  %v2098 = vrot.slane %v2012, 1
  %v2099 = vsel %vm2093, %v2097, %v2098
  %v2100 = vrot.slane %v2013, 1
  %v2101 = vrot.slane %v2014, 1
  %v2102 = vsel %vm2093, %v2100, %v2101
  %v2103 = vrot.slane %v2015, 1
  %v2104 = vrot.slane %v2016, 1
  %v2105 = vsel %vm2093, %v2103, %v2104
  %v2106 = vrot.slane %v2017, 1
  %v2107 = vrot.slane %v2018, 1
  %v2108 = vsel %vm2093, %v2106, %v2107
  %v2109 = vrot.slane %v2019, 1
  %v2110 = vrot.slane %v2020, 1
  %v2111 = vsel %vm2093, %v2109, %v2110
  %v2112 = vrot.slane %v2021, 1
  %v2113 = vrot.slane %v2022, 1
  %v2114 = vsel %vm2093, %v2112, %v2113
  %v2115 = vrot.slane %v2023, 1
  %v2116 = vrot.slane %v2024, 1
  %v2117 = vsel %vm2093, %v2115, %v2116
  %v2118 = vrot.slane %v2025, 1
  %v2119 = vrot.slane %v2026, 1
  %v2120 = vsel %vm2093, %v2118, %v2119
  %v2121 = vrot.slane %v2027, 1
  %v2122 = vrot.slane %v2028, 1
  %v2123 = vsel %vm2093, %v2121, %v2122
  %v2124 = vrot.slane %v2029, 1
  %v2125 = vrot.slane %v2030, 1
  %v2126 = vsel %vm2093, %v2124, %v2125
  %v2127 = vrot.slane %v2031, 1
  %v2128 = vrot.slane %v2032, 1
  %v2129 = vsel %vm2093, %v2127, %v2128
  %v2130 = vrot.slane %v2033, 1
  %v2131 = vrot.slane %v2034, 1
  %v2132 = vsel %vm2093, %v2130, %v2131
  %v2133 = vrot.slane %v2035, 1
  %v2134 = vrot.slane %v2036, 1
  %v2135 = vsel %vm2093, %v2133, %v2134
  %v2164 = vadd.f32 %v1981, %v2096
  %v2165 = vadd.f32 %v1982, %v2095
  %v2166 = vadd.f32 %v1983, %v2099
  %v2167 = vadd.f32 %v1984, %v2098
  %v2168 = vadd.f32 %v1985, %v2102
  %v2169 = vadd.f32 %v1986, %v2101
  %v2170 = vadd.f32 %v1987, %v2105
  %v2171 = vadd.f32 %v1988, %v2104
  %v2172 = vadd.f32 %v1989, %v2108
  %v2173 = vadd.f32 %v1990, %v2107
  %v2174 = vadd.f32 %v1991, %v2111
  %v2175 = vadd.f32 %v1992, %v2110
  %v2176 = vadd.f32 %v1993, %v2114
  %v2177 = vadd.f32 %v1994, %v2113
  %v2178 = vadd.f32 %v1995, %v2117
  %v2179 = vadd.f32 %v1996, %v2116
  %v2180 = vadd.f32 %v1997, %v2120
  %v2181 = vadd.f32 %v1998, %v2119
  %v2182 = vadd.f32 %v1999, %v2123
  %v2183 = vadd.f32 %v2000, %v2122
  %v2184 = vadd.f32 %v2001, %v2126
  %v2185 = vadd.f32 %v2002, %v2125
  %v2186 = vadd.f32 %v2003, %v2129
  %v2187 = vadd.f32 %v2004, %v2128
  %v2188 = vadd.f32 %v2005, %v2132
  %v2189 = vadd.f32 %v2006, %v2131
  %v2190 = vadd.f32 %v2007, %v2135
  %v2191 = vadd.f32 %v2008, %v2134
  %vm2220 = vcmask 1045504
  %v2221 = vrot.slane %v2037, 2
  %v2222 = vrot.slane %v2038, 2
  %v2223 = vsel %vm2220, %v2221, %v2222
  %v2224 = vrot.slane %v2039, 2
  %v2225 = vrot.slane %v2040, 2
  %v2226 = vsel %vm2220, %v2224, %v2225
  %v2227 = vrot.slane %v2041, 2
  %v2228 = vrot.slane %v2042, 2
  %v2229 = vsel %vm2220, %v2227, %v2228
  %v2230 = vrot.slane %v2043, 2
  %v2231 = vrot.slane %v2044, 2
  %v2232 = vsel %vm2220, %v2230, %v2231
  %v2233 = vrot.slane %v2045, 2
  %v2234 = vrot.slane %v2046, 2
  %v2235 = vsel %vm2220, %v2233, %v2234
  %v2236 = vrot.slane %v2047, 2
  %v2237 = vrot.slane %v2048, 2
  %v2238 = vsel %vm2220, %v2236, %v2237
  %v2239 = vrot.slane %v2049, 2
  %v2240 = vrot.slane %v2050, 2
  %v2241 = vsel %vm2220, %v2239, %v2240
  %v2242 = vrot.slane %v2051, 2
  %v2243 = vrot.slane %v2052, 2
  %v2244 = vsel %vm2220, %v2242, %v2243
  %v2245 = vrot.slane %v2053, 2
  %v2246 = vrot.slane %v2054, 2
  %v2247 = vsel %vm2220, %v2245, %v2246
  %v2248 = vrot.slane %v2055, 2
  %v2249 = vrot.slane %v2056, 2
  %v2250 = vsel %vm2220, %v2248, %v2249
  %v2251 = vrot.slane %v2057, 2
  %v2252 = vrot.slane %v2058, 2
  %v2253 = vsel %vm2220, %v2251, %v2252
  %v2254 = vrot.slane %v2059, 2
  %v2255 = vrot.slane %v2060, 2
  %v2256 = vsel %vm2220, %v2254, %v2255
  %v2257 = vrot.slane %v2061, 2
  %v2258 = vrot.slane %v2062, 2
  %v2259 = vsel %vm2220, %v2257, %v2258
  %v2260 = vrot.slane %v2063, 2
  %v2261 = vrot.slane %v2064, 2
  %v2262 = vsel %vm2220, %v2260, %v2261
  %v2291 = vadd.f32 %v2164, %v2223
  %v2292 = vadd.f32 %v2165, %v2222
  %v2293 = vadd.f32 %v2166, %v2226
  %v2294 = vadd.f32 %v2167, %v2225
  %v2295 = vadd.f32 %v2168, %v2229
  %v2296 = vadd.f32 %v2169, %v2228
  %v2297 = vadd.f32 %v2170, %v2232
  %v2298 = vadd.f32 %v2171, %v2231
  %v2299 = vadd.f32 %v2172, %v2235
  %v2300 = vadd.f32 %v2173, %v2234
  %v2301 = vadd.f32 %v2174, %v2238
  %v2302 = vadd.f32 %v2175, %v2237
  %v2303 = vadd.f32 %v2176, %v2241
  %v2304 = vadd.f32 %v2177, %v2240
  %v2305 = vadd.f32 %v2178, %v2244
  %v2306 = vadd.f32 %v2179, %v2243
  %v2307 = vadd.f32 %v2180, %v2247
  %v2308 = vadd.f32 %v2181, %v2246
  %v2309 = vadd.f32 %v2182, %v2250
  %v2310 = vadd.f32 %v2183, %v2249
  %v2311 = vadd.f32 %v2184, %v2253
  %v2312 = vadd.f32 %v2185, %v2252
  %v2313 = vadd.f32 %v2186, %v2256
  %v2314 = vadd.f32 %v2187, %v2255
  %v2315 = vadd.f32 %v2188, %v2259
  %v2316 = vadd.f32 %v2189, %v2258
  %v2317 = vadd.f32 %v2190, %v2262
  %v2318 = vadd.f32 %v2191, %v2261
  %2319 = vst [vmem:[%s2] sm:$0xff] %v2291
  %2320 = vst [vmem:[%s2 + $0x8] sm:$0x3f] %v2292
  %2321 = vst [vmem:[%s2 + $0x10] sm:$0xff] %v2293
  %2322 = vst [vmem:[%s2 + $0x18] sm:$0x3f] %v2294
  %2323 = vst [vmem:[%s2 + $0x20] sm:$0xff] %v2295
  %2324 = vst [vmem:[%s2 + $0x28] sm:$0x3f] %v2296
  %2325 = vst [vmem:[%s2 + $0x30] sm:$0xff] %v2297
  %2326 = vst [vmem:[%s2 + $0x38] sm:$0x3f] %v2298
  %2327 = vst [vmem:[%s2 + $0x40] sm:$0xff] %v2299
  %2328 = vst [vmem:[%s2 + $0x48] sm:$0x3f] %v2300
  %2329 = vst [vmem:[%s2 + $0x50] sm:$0xff] %v2301
  %2330 = vst [vmem:[%s2 + $0x58] sm:$0x3f] %v2302
  %2331 = vst [vmem:[%s2 + $0x60] sm:$0xff] %v2303
  %2332 = vst [vmem:[%s2 + $0x68] sm:$0x3f] %v2304
  %2333 = vst [vmem:[%s2 + $0x70] sm:$0xff] %v2305
  %2334 = vst [vmem:[%s2 + $0x78] sm:$0x3f] %v2306
  %2335 = vst [vmem:[%s2 + $0x80] sm:$0xff] %v2307
  %2336 = vst [vmem:[%s2 + $0x88] sm:$0x3f] %v2308
  %2337 = vst [vmem:[%s2 + $0x90] sm:$0xff] %v2309
  %2338 = vst [vmem:[%s2 + $0x98] sm:$0x3f] %v2310
  %2339 = vst [vmem:[%s2 + $0xa0] sm:$0xff] %v2311
  %2340 = vst [vmem:[%s2 + $0xa8] sm:$0x3f] %v2312
  %2341 = vst [vmem:[%s2 + $0xb0] sm:$0xff] %v2313
  %2342 = vst [vmem:[%s2 + $0xb8] sm:$0x3f] %v2314
  %2343 = vst [vmem:[%s2 + $0xc0] sm:$0xff] %v2315
  %2344 = vst [vmem:[%s2 + $0xc8] sm:$0x3f] %v2316
  %2345 = vst [vmem:[%s2 + $0xd0] sm:$0xff] %v2317
  %2346 = vst [vmem:[%s2 + $0xd8] sm:$0x3f] %v2318
  // Predicated region
  $region10: #{relu_conv2d.1} parent=0 // pred_check
    _
  $region11: #{relu_conv2d.1} parent=0 // pred_check_branch
    %2348 = sbr.rel (0) target = $region13
  $region12: #{relu_conv2d.1} parent=0 // pred_region
    _
  $region13: #{relu_conv2d.1} parent=0 // pred_fallthru
    _
  // Predicated region
  $region14: #{relu_conv2d.1} parent=0 // pred_check
    _
  $region15: #{relu_conv2d.1} parent=0 // pred_check_branch
    %2350 = sbr.rel (0) target = $region17
  $region16: #{relu_conv2d.1} parent=0 // pred_region
    _
  $region17: #{relu_conv2d.1} parent=0 // pred_fallthru
    _

</llo_original>
